<compile_context>
chip_gen: v7x
topology: tpu7x:2x2x1
jax: 0.10.0
libtpu: 0.0.40
codegen_flags: <defaults>
</compile_context>

<pallas_src>
import jax
import jax.numpy as jnp
import numpy as np
from jax.experimental import pallas as pl
from jax.experimental.pallas import tpu as pltpu


def channel_attention_kernel(x_ref, w1p_ref, w2x2_ref, o_ref):
    # x_ref:    (C_in,  P_TILE)   channels x flattened (T,H,W) positions
    # w1p_ref:  (C_out, C_in)     fc1 weight with the adaptive-avg-pool folded in
    # w2x2_ref: (C_out, C_out)    2 * fc2 weight (avg_out + max_out folded in)
    # o_ref:    (C_out, P_TILE)
    h = jnp.maximum(
        jnp.dot(w1p_ref[...], x_ref[...], preferred_element_type=jnp.float32),
        0.0)
    out = jnp.dot(w2x2_ref[...], h, preferred_element_type=jnp.float32)
    o_ref[...] = jax.nn.sigmoid(out) * out          # out = sigmoid(out) * out


def make_adaptive_avg_pool_matrix(c_in, c_out, dtype=jnp.float32):
    """Adaptive average pooling (size c_in -> c_out) expressed as a matrix."""
    m = np.zeros((c_out, c_in), dtype=np.float32)
    for i in range(c_out):
        start = (i * c_in) // c_out
        end = -(-((i + 1) * c_in) // c_out)  # ceil
        m[i, start:end] = 1.0 / (end - start)
    return jnp.asarray(m, dtype=dtype)


def channel_attention(x, pool_mat, w1, w2, *, p_tile=8192):
    """x: (N, C_in, T, H, W) float32 -> (N, C_out, T, H, W) float32."""
    N, C_in, T, H, W = x.shape
    C_out = w1.shape[0]
    P = T * H * W

    # Fold the adaptive avg pool into fc1 and the avg+max doubling into fc2.
    w1p = jnp.dot(w1, pool_mat).astype(jnp.float32)    # (C_out, C_in)
    w2x2 = (2.0 * w2).astype(jnp.float32)              # (C_out, C_out)

    # Lane-dense tile over flattened positions; no transposes, only reshapes.
    pt = min(p_tile, P)
    pt = ((pt + 127) // 128) * 128                     # lane-align the tile
    p_pad = pl.cdiv(P, pt) * pt

    x3d = x.reshape(N, C_in, P)                        # free reshape
    if p_pad != P:
        x3d = jnp.pad(x3d, ((0, 0), (0, 0), (0, p_pad - P)))

    out3d = pl.pallas_call(
        channel_attention_kernel,
        out_shape=jax.ShapeDtypeStruct((N, C_out, p_pad), jnp.float32),
        grid_spec=pltpu.PrefetchScalarGridSpec(
            num_scalar_prefetch=0,
            grid=(N, p_pad // pt),
            in_specs=[
                pl.BlockSpec((pl.Squeezed(), C_in, pt), lambda n, i: (n, 0, i)),
                pl.BlockSpec((C_out, C_in), lambda n, i: (0, 0)),
                pl.BlockSpec((C_out, C_out), lambda n, i: (0, 0)),
            ],
            out_specs=pl.BlockSpec((pl.Squeezed(), C_out, pt),
                                   lambda n, i: (n, 0, i)),
        ),
        compiler_params=pltpu.CompilerParams(
            dimension_semantics=("parallel", "parallel")),
    )(x3d, w1p, w2x2)

    if p_pad != P:
        out3d = out3d[:, :, :P]
    return out3d.reshape(N, C_out, T, H, W)


def reference(x, pool_mat, w1, w2):
    """Pure-JAX reference mirroring the PyTorch forward (incl. its x reuse)."""
    pooled = jnp.einsum('oc,ncthw->nothw', pool_mat, x)

    def fc_path(z):
        h = jnp.maximum(jnp.einsum('oc,ncthw->nothw', w1, z), 0.0)
        return jnp.einsum('oc,ncthw->nothw', w2, h)

    avg_out = fc_path(pooled)
    # max branch: AdaptiveMaxPool3d on the already-pooled x (depth==C_out) is identity.
    max_out = fc_path(pooled)
    out = avg_out + max_out
    return jax.nn.sigmoid(out) * out


if __name__ == "__main__":
    # Small shapes consistent with a 5-D video tensor (N, C, T, H, W).
    N, C_in, T, H, W = 2, 8, 8, 16, 16
    C_out = 4  # out_channels

    key = jax.random.PRNGKey(0)
    kx, k1, k2 = jax.random.split(key, 3)

    x = jax.random.normal(kx, (N, C_in, T, H, W), dtype=jnp.float32)
    # Deterministic synthetic Conv3d(C_out, C_out, 1, bias=False) weights.
    w1 = jax.random.normal(k1, (C_out, C_out), dtype=jnp.float32) * 0.5
    w2 = jax.random.normal(k2, (C_out, C_out), dtype=jnp.float32) * 0.5
    pool_mat = make_adaptive_avg_pool_matrix(C_in, C_out)

    out = channel_attention(x, pool_mat, w1, w2)
    out = jax.block_until_ready(out)

    ref = reference(x, pool_mat, w1, w2)
    assert out.shape == (N, C_out, T, H, W), out.shape
    np.testing.assert_allclose(np.asarray(out), np.asarray(ref),
                               rtol=1e-5, atol=1e-5)

    # TODO(synk): the PyTorch forward's debug `print(avg_out.shape, ...)` is
    # intentionally omitted (no side-effecting print in the kernel path).
    print("KERNEL_OK")
</pallas_src>

<mosaic_0001>
module attributes {stable_mosaic.version = 11 : i64} {
  func.func @channel_attention_kernel(%arg0: i32, %arg1: i32, %arg2: memref<1x8x2048xf32, #tpu.memory_space<vmem>>, %arg3: memref<4x8xf32, #tpu.memory_space<vmem>>, %arg4: memref<4x4xf32, #tpu.memory_space<vmem>>, %arg5: memref<1x4x2048xf32, #tpu.memory_space<vmem>>) attributes {dimension_semantics = [#tpu.dimension_semantics<parallel>, #tpu.dimension_semantics<parallel>], iteration_bounds = array<i64: 2, 1>, scalar_prefetch = 0 : i64, scratch_operands = 0 : i64, tpu.core_type = #tpu.core_type<tc>, window_params = [{transform_indices = @transform_0, window_bounds = array<i64: 1, 8, 2048>}, {pipeline_mode = #tpu.pipeline_mode<synchronous>, transform_indices = @transform_1, window_bounds = array<i64: 4, 8>}, {pipeline_mode = #tpu.pipeline_mode<synchronous>, transform_indices = @transform_2, window_bounds = array<i64: 4, 4>}, {transform_indices = @transform_3, window_bounds = array<i64: 1, 4, 2048>}]} {
    %c0 = arith.constant 0 : index
    %c0_0 = arith.constant 0 : index
    %0 = vector.load %arg3[%c0, %c0_0] : memref<4x8xf32, #tpu.memory_space<vmem>>, vector<4x8xf32>
    %c0_1 = arith.constant 0 : index
    %c0_2 = arith.constant 0 : index
    %c0_3 = arith.constant 0 : index
    %1 = vector.load %arg2[%c0_1, %c0_2, %c0_3] : memref<1x8x2048xf32, #tpu.memory_space<vmem>>, vector<1x8x2048xf32>
    %2 = vector.shape_cast %1 : vector<1x8x2048xf32> to vector<8x2048xf32>
    %cst = arith.constant dense<0.000000e+00> : vector<4x2048xf32>
    %3 = tpu.matmul %0, %2, %cst {dimension_numbers = #tpu.dot_dimension_numbers<[1], [0], [0], [1], [0, 0, 1, 1], [], []>} : vector<4x8xf32>, vector<8x2048xf32>, vector<4x2048xf32> -> vector<4x2048xf32>
    %cst_4 = arith.constant 0.000000e+00 : f32
    %4 = vector.broadcast %cst_4 : f32 to vector<4x2048xf32>
    %5 = arith.maximumf %3, %4 : vector<4x2048xf32>
    %c0_5 = arith.constant 0 : index
    %c0_6 = arith.constant 0 : index
    %6 = vector.load %arg4[%c0_5, %c0_6] : memref<4x4xf32, #tpu.memory_space<vmem>>, vector<4x4xf32>
    %cst_7 = arith.constant dense<0.000000e+00> : vector<4x2048xf32>
    %7 = tpu.matmul %6, %5, %cst_7 {dimension_numbers = #tpu.dot_dimension_numbers<[1], [0], [0], [1], [0, 0, 1, 1], [], []>} : vector<4x4xf32>, vector<4x2048xf32>, vector<4x2048xf32> -> vector<4x2048xf32>
    %8 = arith.negf %7 : vector<4x2048xf32>
    %9 = math.exp %8 : vector<4x2048xf32>
    %cst_8 = arith.constant 1.000000e+00 : f32
    %10 = vector.broadcast %cst_8 : f32 to vector<4x2048xf32>
    %11 = arith.addf %10, %9 : vector<4x2048xf32>
    %12 = arith.divf %10, %11 : vector<4x2048xf32>
    %13 = arith.mulf %12, %7 : vector<4x2048xf32>
    %c0_9 = arith.constant 0 : index
    %c0_10 = arith.constant 0 : index
    %c0_11 = arith.constant 0 : index
    %14 = vector.load %arg5[%c0_9, %c0_10, %c0_11] : memref<1x4x2048xf32, #tpu.memory_space<vmem>>, vector<1x4x2048xf32>
    %15 = vector.shape_cast %14 : vector<1x4x2048xf32> to vector<4x2048xf32>
    %16 = vector.shape_cast %13 : vector<4x2048xf32> to vector<1x4x2048xf32>
    tpu.vector_store %arg5[%c0_9, %c0_10, %c0_11], %16 {strides = array<i32>} : memref<1x4x2048xf32, #tpu.memory_space<vmem>>, vector<1x4x2048xf32>,
    return
  }
  func.func @transform_0(%arg0: i32, %arg1: i32) -> (i32, i32, i32) {
    %c0_i32 = arith.constant 0 : i32
    %c0_i32_0 = arith.constant 0 : i32
    return %arg0, %c0_i32, %arg1 : i32, i32, i32
  }
  func.func @transform_1(%arg0: i32, %arg1: i32) -> (i32, i32) {
    %c0_i32 = arith.constant 0 : i32
    %c0_i32_0 = arith.constant 0 : i32
    %c0_i32_1 = arith.constant 0 : i32
    return %c0_i32, %c0_i32_0 : i32, i32
  }
  func.func @transform_2(%arg0: i32, %arg1: i32) -> (i32, i32) {
    %c0_i32 = arith.constant 0 : i32
    %c0_i32_0 = arith.constant 0 : i32
    %c0_i32_1 = arith.constant 0 : i32
    return %c0_i32, %c0_i32_0 : i32, i32
  }
  func.func @transform_3(%arg0: i32, %arg1: i32) -> (i32, i32, i32) {
    %c0_i32 = arith.constant 0 : i32
    %c0_i32_0 = arith.constant 0 : i32
    return %arg0, %c0_i32, %arg1 : i32, i32, i32
  }
}

</mosaic_0001>

<llo_original>
// kernel: tpu_custom_call.1
$region0: #{tpu_custom_call.1}
  #allocation0 [shape = 'u32[]', space=smem, size = 0x4, offset = 0x4, fixed_abs, tag = 'smem constant byte address 0x4 - core index']
  #allocation1 [shape = 'u32[144,128]{1,0:T(1,128)}', space=vmem, size = 0x12000, scoped, tag = 'internal scratch']
  %s0 = inlined_call_operand.hbm [shape: f32[2,8,2048], index: 0, kind: input, shape index: {}]
  %s1 = inlined_call_operand.hbm [shape: f32[4,8], index: 1, kind: input, shape index: {}]
  %s2 = inlined_call_operand.vmem [shape: f32[4,4], index: 2, kind: input, shape index: {}]
  %s3 = inlined_call_operand.hbm [shape: f32[2,4,2048], index: 3, kind: output, shape index: {}]
  %s4 = sld [smem:[#allocation0]]
  $region53: #{tpu_custom_call.1} parent=0
    _
  %s6 = ssub.s32 1, %s4
  %s7 = scalar_select 0, %s6, %s4
  $region1: #{tpu_custom_call.1} parent=0
    #allocation2 [shape = 'u8[131072]{0}', space=vmem, size = 0x20000, scoped, tag = 'input window, operand 0']
    #allocation3 [shape = 's32[2]{0}', space=sflag, size = 0x8, scoped, tag = 'scoped memory for tpu_custom_call.1']
    #allocation4 [shape = 's32[2]{0}', space=sflag, size = 0x8, scoped, tag = 'scoped memory for tpu_custom_call.1']
    #allocation5 [shape = 'u8[2048]{0}', space=vmem, size = 0x800, scoped, tag = 'input window, operand 1, single buffered']
    #allocation6 [shape = 's32[1]{0}', space=sflag, size = 0x4, scoped, tag = 'scoped memory for tpu_custom_call.1']
    #allocation7 [shape = 'u8[65536]{0}', space=vmem, size = 0x10000, scoped, tag = 'output window, operand 0']
    %8 = vsyncpa [#allocation3], 0
    %s9 = scalar_lea.sflag [#allocation3], 1
    %10 = vsyncpa %s9, 0
    %11 = vsyncpa [#allocation6], 0
    %12 = vsyncpa [#allocation4], 0
    %s13 = scalar_lea.sflag [#allocation4], 1
    %14 = vsyncpa %s13, 0
    loop: start=0, step=1, limit=4
    $region2: #{tpu_custom_call.1} parent=1 // loop_pre_header
      _
    $region3: #{tpu_custom_call.1} parent=1 // loop_header
      %s16 = sphi 0, %s20
      %p17 = scmp.ge.s32.totalorder %s16, 4
      %s23 = sphi 0, %s35
      %s24 = sphi 0, %s31
      %s25 = sphi 0, %s23
      %s26 = sphi 0, %s24
      %s27 = sphi 0, %s25
      %s28 = sphi 0, %s26
      %s40 = sphi 0, %s42
      %s43 = sphi 0, %s40
      %s44 = sphi 0, %s43
      %s60 = sphi 0, %s44
      %s64 = sphi 0, %s64
      %s66 = sphi 0, %s64
      %s67 = sphi 0, %s66
      %s81 = sphi 0, %s67
      %s85 = sphi 0, %s85
      %s87 = sphi 0, %s85
      %s88 = sphi 0, %s87
      %s102 = sphi 0, %s88
      %s110 = sphi 0, %s112
      %s113 = sphi 0, %s110
      %s114 = sphi 0, %s113
      %s130 = sphi 0, %s114
    $region4: #{tpu_custom_call.1} parent=1 // loop_header_branch
      %19 = sbr.rel (%p17) target = $region8
    $region5: #{tpu_custom_call.1} parent=1 // loop_body
      %s21 = ssub.s32 %s16, 1
      %s22 = ssub.s32 %s16, 2
      %s29 = sadd.s32 1, %s24
      %p30 = scmp.ge.s32.totalorder %s29, 1
      %s31 = scalar_select %p30, 0, %s29
      %s32 = sadd.s32 1, %s23
      %s33 = scalar_select %p30, %s32, %s23
      %p34 = scmp.ge.s32.totalorder %s33, 2
      %s35 = scalar_select %p34, 0, %s33
      %s36 = ssub.s32 %s23, %s35
      %s37 = ssub.s32 %s24, %s31
      %s38 = sor.u32 %s36, %s37
      %p39 = scmp.eq.s32.totalorder %s38, 0
      %s41 = sadd.s32 %s40, 1
      %s42 = scalar_select %p39, %s40, %s41
      %p45 = pneg %p39
      %p46 = scmp.eq.s32.totalorder %s16, 1
      %p47 = por %p45, %p46
      %p48 = scmp.ne.s32.totalorder %s40, %s43
      %p49 = scmp.eq.s32.totalorder %s16, 0
      %p50 = por %p48, %p49
      %p51 = scmp.ne.s32.totalorder %s40, %s43
      %p52 = scmp.eq.s32.totalorder %s21, 1
      %p53 = por %p51, %p52
      %p54 = scmp.ne.s32.totalorder %s43, %s44
      %p55 = scmp.eq.s32.totalorder %s21, 0
      %p56 = por %p54, %p55
      %p57 = scmp.ne.s32.totalorder %s43, %s44
      %p58 = scmp.eq.s32.totalorder %s22, 1
      %p59 = por %p57, %p58
      %p61 = scmp.ne.s32.totalorder %s44, %s60
      %p62 = scmp.eq.s32.totalorder %s22, 0
      %p63 = por %p61, %p62
      %s65 = sadd.s32 %s64, 1
      %p68 = scmp.eq.s32.totalorder %s16, 1
      %p69 = scmp.ne.s32.totalorder %s64, %s66
      %p70 = scmp.eq.s32.totalorder %s16, 0
      %p71 = por %p69, %p70
      %p72 = scmp.ne.s32.totalorder %s64, %s66
      %p73 = scmp.eq.s32.totalorder %s21, 1
      %p74 = por %p72, %p73
      %p75 = scmp.ne.s32.totalorder %s66, %s67
      %p76 = scmp.eq.s32.totalorder %s21, 0
      %p77 = por %p75, %p76
      %p78 = scmp.ne.s32.totalorder %s66, %s67
      %p79 = scmp.eq.s32.totalorder %s22, 1
      %p80 = por %p78, %p79
      %p82 = scmp.ne.s32.totalorder %s67, %s81
      %p83 = scmp.eq.s32.totalorder %s22, 0
      %p84 = por %p82, %p83
      %s86 = sadd.s32 %s85, 1
      %p89 = scmp.eq.s32.totalorder %s16, 1
      %p90 = scmp.ne.s32.totalorder %s85, %s87
      %p91 = scmp.eq.s32.totalorder %s16, 0
      %p92 = por %p90, %p91
      %p93 = scmp.ne.s32.totalorder %s85, %s87
      %p94 = scmp.eq.s32.totalorder %s21, 1
      %p95 = por %p93, %p94
      %p96 = scmp.ne.s32.totalorder %s87, %s88
      %p97 = scmp.eq.s32.totalorder %s21, 0
      %p98 = por %p96, %p97
      %p99 = scmp.ne.s32.totalorder %s87, %s88
      %p100 = scmp.eq.s32.totalorder %s22, 1
      %p101 = por %p99, %p100
      %p103 = scmp.ne.s32.totalorder %s88, %s102
      %p104 = scmp.eq.s32.totalorder %s22, 0
      %p105 = por %p103, %p104
      %s106 = ssub.s32 %s23, %s35
      %s107 = ssub.s32 %s24, %s31
      %s108 = sor.u32 %s106, %s107
      %p109 = scmp.eq.s32.totalorder %s108, 0
      %s111 = sadd.s32 %s110, 1
      %s112 = scalar_select %p109, %s110, %s111
      %p115 = pneg %p109
      %p116 = scmp.eq.s32.totalorder %s16, 1
      %p117 = por %p115, %p116
      %p118 = scmp.ne.s32.totalorder %s110, %s113
      %p119 = scmp.eq.s32.totalorder %s16, 0
      %p120 = por %p118, %p119
      %p121 = scmp.ne.s32.totalorder %s110, %s113
      %p122 = scmp.eq.s32.totalorder %s21, 1
      %p123 = por %p121, %p122
      %p124 = scmp.ne.s32.totalorder %s113, %s114
      %p125 = scmp.eq.s32.totalorder %s21, 0
      %p126 = por %p124, %p125
      %p127 = scmp.ne.s32.totalorder %s113, %s114
      %p128 = scmp.eq.s32.totalorder %s22, 1
      %p129 = por %p127, %p128
      %p131 = scmp.ne.s32.totalorder %s114, %s130
      %p132 = scmp.eq.s32.totalorder %s22, 0
      %p133 = por %p131, %p132
      %p134 = scmp.le.s32.totalorder 1, %s16
      %p135 = scmp.lt.s32.totalorder %s16, 3
      %p136 = pnand %p134, %p135
      %p137 = pneg %p136
      // Predicated region
      $region9: #{tpu_custom_call.1} parent=5 // pred_check
        _
      $region10: #{tpu_custom_call.1} parent=5 // pred_check_branch
        %139 = sbr.rel (%p136) target = $region12
      $region11: #{tpu_custom_call.1} parent=5 // pred_region
        %s140 = ssub.s32 %s16, 1
        // Predicated region
        $region13: #{tpu_custom_call.1} parent=11 // pred_check
          %p141 = pneg %p77
        $region14: #{tpu_custom_call.1} parent=11 // pred_check_branch
          %143 = sbr.rel (%p141) target = $region16
        $region15: #{tpu_custom_call.1} parent=11 // pred_region
          %s145 = ssub.s32 64, 64
          %146 = vsyncadd [#allocation6], %s145
          %s148 = sshll.u32 [#allocation5], 4
          %s149 = int_to_ptr.vmem [resolvable:$true] %s148
          %151 = dma.hbm_to_vmem [thread:$0]  %s1, 64, %s149, [#allocation6]
        $region16: #{tpu_custom_call.1} parent=11 // pred_fallthru
          _
        // Predicated region
        $region17: #{tpu_custom_call.1} parent=11 // pred_check
          %p152 = pneg %p98
        $region18: #{tpu_custom_call.1} parent=11 // pred_check_branch
          %154 = sbr.rel (%p152) target = $region20
        $region19: #{tpu_custom_call.1} parent=11 // pred_region
          _
        $region20: #{tpu_custom_call.1} parent=11 // pred_fallthru
          _
      $region12: #{tpu_custom_call.1} parent=5 // pred_fallthru
        _
      %p155 = scmp.lt.s32.totalorder %s16, 2
      // Predicated region
      $region21: #{tpu_custom_call.1} parent=5 // pred_check
        %p156 = pneg %p155
      $region22: #{tpu_custom_call.1} parent=5 // pred_check_branch
        %158 = sbr.rel (%p156) target = $region24
      $region23: #{tpu_custom_call.1} parent=5 // pred_region
        // Predicated region
        $region25: #{tpu_custom_call.1} parent=23 // pred_check
          %p159 = pneg %p50
        $region26: #{tpu_custom_call.1} parent=23 // pred_check_branch
          %161 = sbr.rel (%p159) target = $region28
        $region27: #{tpu_custom_call.1} parent=23 // pred_region
          %s162 = sand.u32 %s40, 1
          %s163 = scalar_lea.sflag [#allocation3], %s162
          %s164 = sand.u32 %s40, 1
          %s165 = smul.addr %s164, 128
          %s166 = scalar_lea.vmem [#allocation2], %s165
          %s167 = smul.u32 16, %s24
          %s169 = ssub.s32 2048, 2048
          %170 = vsyncadd %s163, %s169
          %s171 = smul.addr %s23, 16
          %s172 = sadd.s32 %s167, %s171
          %s173 = smul.addr %s172, 128
          %s174 = scalar_lea.hbm %s0, %s173
          %s176 = sshll.u32 %s166, 4
          %s177 = int_to_ptr.vmem [resolvable:$true] %s176
          %179 = dma.hbm_to_vmem [thread:$0]  %s174, 2048, %s177, %s163
        $region28: #{tpu_custom_call.1} parent=23 // pred_fallthru
          _
      $region24: #{tpu_custom_call.1} parent=5 // pred_fallthru
        _
      %p180 = scmp.le.s32.totalorder 1, %s16
      %p181 = scmp.lt.s32.totalorder %s16, 3
      %p182 = pnand %p180, %p181
      %p183 = pneg %p182
      // Predicated region
      $region29: #{tpu_custom_call.1} parent=5 // pred_check
        _
      $region30: #{tpu_custom_call.1} parent=5 // pred_check_branch
        %185 = sbr.rel (%p182) target = $region32
      $region31: #{tpu_custom_call.1} parent=5 // pred_region
        %s186 = ssub.s32 %s16, 1
        %s187 = sand.u32 %s43, 1
        %s188 = scalar_lea.sflag [#allocation3], %s187
        %s189 = sand.u32 %s43, 1
        %s190 = smul.addr %s189, 128
        %s191 = scalar_lea.vmem [#allocation2], %s190
        // Predicated region
        $region33: #{tpu_custom_call.1} parent=31 // pred_check
          %p192 = pneg %p56
        $region34: #{tpu_custom_call.1} parent=31 // pred_check_branch
          %194 = sbr.rel (%p192) target = $region36
        $region35: #{tpu_custom_call.1} parent=31 // pred_region
          %195 = dma.done %s188, 2048
        $region36: #{tpu_custom_call.1} parent=31 // pred_fallthru
          _
        // Predicated region
        $region37: #{tpu_custom_call.1} parent=31 // pred_check
          %p196 = pneg %p77
        $region38: #{tpu_custom_call.1} parent=31 // pred_check_branch
          %198 = sbr.rel (%p196) target = $region40
        $region39: #{tpu_custom_call.1} parent=31 // pred_region
          %199 = dma.done [#allocation6], 64
        $region40: #{tpu_custom_call.1} parent=31 // pred_fallthru
          _
        %s200 = sand.u32 %s43, 1
        %s201 = scalar_lea.sflag [#allocation3], %s200
        %s202 = sand.u32 %s43, 1
        %s203 = smul.addr %s202, 128
        %s204 = scalar_lea.vmem [#allocation2], %s203
        %p205 = pneg %p56
        %p206 = pneg %p53
        %p207 = pneg %p77
        %p208 = pneg %p74
        %p209 = pneg %p98
        %p210 = pneg %p95
        %p211 = pneg %p126
        %p212 = pneg %p123
        %s213 = sand.u32 %s113, 1
        %s214 = scalar_lea.sflag [#allocation4], %s213
        %s215 = sand.u32 %s113, 1
        %s216 = smul.addr %s215, 64
        %s217 = scalar_lea.vmem [#allocation7], %s216
        %s218 = smul.u32 16, %s26
        %s219 = smul.u32 16, %s26
        %v220 = vld [vmem:[#allocation5] sm:$0xf]
        %v221 = vld [vmem:[%s191] sm:$0xff]
        %v222 = vld [vmem:[%s191 + $0x8] sm:$0xff]
        %v223 = vld [vmem:[%s191 + $0x10] sm:$0xff]
        %v224 = vld [vmem:[%s191 + $0x18] sm:$0xff]
        %v225 = vld [vmem:[%s191 + $0x20] sm:$0xff]
        %v226 = vld [vmem:[%s191 + $0x28] sm:$0xff]
        %v227 = vld [vmem:[%s191 + $0x30] sm:$0xff]
        %v228 = vld [vmem:[%s191 + $0x38] sm:$0xff]
        %v229 = vld [vmem:[%s191 + $0x40] sm:$0xff]
        %v230 = vld [vmem:[%s191 + $0x48] sm:$0xff]
        %v231 = vld [vmem:[%s191 + $0x50] sm:$0xff]
        %v232 = vld [vmem:[%s191 + $0x58] sm:$0xff]
        %v233 = vld [vmem:[%s191 + $0x60] sm:$0xff]
        %v234 = vld [vmem:[%s191 + $0x68] sm:$0xff]
        %v235 = vld [vmem:[%s191 + $0x70] sm:$0xff]
        %v236 = vld [vmem:[%s191 + $0x78] sm:$0xff]
        %vm237 = vcmask 64512
        %v239 = vsel %vm237, %v220, 0
        %241 = vmatprep.subr.mxu0 %v222
        %242 = vmatpush1.msra.mxu0 %v221
        %243 = vmatprep.subr.mxu0 0.0
        %244 = vmatpush1.msra.mxu0 0.0
        %245 = vmatprep.subr.mxu0 0.0
        %246 = vmatpush1.msra.mxu0 0.0
        %247 = vmatprep.subr.mxu0 0.0
        %248 = vmatpush1.msra.mxu0 0.0
        %249 = vmatprep.subr.mxu0 0.0
        %250 = vmatpush1.msra.mxu0 0.0
        %251 = vmatprep.subr.mxu0 0.0
        %252 = vmatpush1.msra.mxu0 0.0
        %253 = vmatprep.subr.mxu0 0.0
        %254 = vmatpush1.msra.mxu0 0.0
        %255 = vmatprep.subr.mxu0 0.0
        %256 = vmatpush1.msra.mxu0 0.0
        %257 = vmatprep.subr.mxu0 0.0
        %258 = vmatpush1.msra.mxu0 0.0
        %259 = vmatprep.subr.mxu0 0.0
        %260 = vmatpush1.msra.mxu0 0.0
        %261 = vmatprep.subr.mxu0 0.0
        %262 = vmatpush1.msra.mxu0 0.0
        %263 = vmatprep.subr.mxu0 0.0
        %264 = vmatpush1.msra.mxu0 0.0
        %265 = vmatprep.subr.mxu0 0.0
        %266 = vmatpush1.msra.mxu0 0.0
        %267 = vmatprep.subr.mxu0 0.0
        %268 = vmatpush1.msra.mxu0 0.0
        %269 = vmatprep.subr.mxu0 0.0
        %270 = vmatpush1.msra.mxu0 0.0
        %271 = vmatprep.subr.mxu0 0.0
        %272 = vmatpush1.msra.mxu0 0.0
        %273 = vmatprep.subr.mxu0 0.0
        %274 = vmatpush1.msra.mxu0 0.0
        %275 = vmatprep.subr.mxu0 0.0
        %276 = vmatpush1.msra.mxu0 0.0
        %277 = vmatprep.subr.mxu0 0.0
        %278 = vmatpush1.msra.mxu0 0.0
        %279 = vmatprep.subr.mxu0 0.0
        %280 = vmatpush1.msra.mxu0 0.0
        %281 = vmatprep.subr.mxu0 0.0
        %282 = vmatpush1.msra.mxu0 0.0
        %283 = vmatprep.subr.mxu0 0.0
        %284 = vmatpush1.msra.mxu0 0.0
        %285 = vmatprep.subr.mxu0 0.0
        %286 = vmatpush1.msra.mxu0 0.0
        %287 = vmatprep.subr.mxu0 0.0
        %288 = vmatpush1.msra.mxu0 0.0
        %289 = vmatprep.subr.mxu0 0.0
        %290 = vmatpush1.msra.mxu0 0.0
        %291 = vmatprep.subr.mxu0 0.0
        %292 = vmatpush1.msra.mxu0 0.0
        %293 = vmatprep.subr.mxu0 0.0
        %294 = vmatpush1.msra.mxu0 0.0
        %295 = vmatprep.subr.mxu0 0.0
        %296 = vmatpush1.msra.mxu0 0.0
        %297 = vmatprep.subr.mxu0 0.0
        %298 = vmatpush1.msra.mxu0 0.0
        %299 = vmatprep.subr.mxu0 0.0
        %300 = vmatpush1.msra.mxu0 0.0
        %301 = vmatprep.subr.mxu0 0.0
        %302 = vmatpush1.msra.mxu0 0.0
        %303 = vmatprep.subr.mxu0 0.0
        %304 = vmatpush1.msra.mxu0 0.0
        %305 = vmatprep.mubr.f32.mxu0 0.0
        %306 = vmatmul.mubr.f32.gmra.mrb[0].mxu0 %v239
        %v307 = vpop.f32.mrb[0].mxu0
        %v308 = vadd.f32 0.0, %v307
        %v309 = vpop.f32.mrb[0].mxu0
        %v310 = vadd.f32 0.0, %v309
        %311 = vdwg.mxu0
        %312 = vmatprep.subr.mxu0 %v224
        %313 = vmatpush1.msra.mxu0 %v223
        %314 = vmatprep.subr.mxu0 0.0
        %315 = vmatpush1.msra.mxu0 0.0
        %316 = vmatprep.subr.mxu0 0.0
        %317 = vmatpush1.msra.mxu0 0.0
        %318 = vmatprep.subr.mxu0 0.0
        %319 = vmatpush1.msra.mxu0 0.0
        %320 = vmatprep.subr.mxu0 0.0
        %321 = vmatpush1.msra.mxu0 0.0
        %322 = vmatprep.subr.mxu0 0.0
        %323 = vmatpush1.msra.mxu0 0.0
        %324 = vmatprep.subr.mxu0 0.0
        %325 = vmatpush1.msra.mxu0 0.0
        %326 = vmatprep.subr.mxu0 0.0
        %327 = vmatpush1.msra.mxu0 0.0
        %328 = vmatprep.subr.mxu0 0.0
        %329 = vmatpush1.msra.mxu0 0.0
        %330 = vmatprep.subr.mxu0 0.0
        %331 = vmatpush1.msra.mxu0 0.0
        %332 = vmatprep.subr.mxu0 0.0
        %333 = vmatpush1.msra.mxu0 0.0
        %334 = vmatprep.subr.mxu0 0.0
        %335 = vmatpush1.msra.mxu0 0.0
        %336 = vmatprep.subr.mxu0 0.0
        %337 = vmatpush1.msra.mxu0 0.0
        %338 = vmatprep.subr.mxu0 0.0
        %339 = vmatpush1.msra.mxu0 0.0
        %340 = vmatprep.subr.mxu0 0.0
        %341 = vmatpush1.msra.mxu0 0.0
        %342 = vmatprep.subr.mxu0 0.0
        %343 = vmatpush1.msra.mxu0 0.0
        %344 = vmatprep.subr.mxu0 0.0
        %345 = vmatpush1.msra.mxu0 0.0
        %346 = vmatprep.subr.mxu0 0.0
        %347 = vmatpush1.msra.mxu0 0.0
        %348 = vmatprep.subr.mxu0 0.0
        %349 = vmatpush1.msra.mxu0 0.0
        %350 = vmatprep.subr.mxu0 0.0
        %351 = vmatpush1.msra.mxu0 0.0
        %352 = vmatprep.subr.mxu0 0.0
        %353 = vmatpush1.msra.mxu0 0.0
        %354 = vmatprep.subr.mxu0 0.0
        %355 = vmatpush1.msra.mxu0 0.0
        %356 = vmatprep.subr.mxu0 0.0
        %357 = vmatpush1.msra.mxu0 0.0
        %358 = vmatprep.subr.mxu0 0.0
        %359 = vmatpush1.msra.mxu0 0.0
        %360 = vmatprep.subr.mxu0 0.0
        %361 = vmatpush1.msra.mxu0 0.0
        %362 = vmatprep.subr.mxu0 0.0
        %363 = vmatpush1.msra.mxu0 0.0
        %364 = vmatprep.subr.mxu0 0.0
        %365 = vmatpush1.msra.mxu0 0.0
        %366 = vmatprep.subr.mxu0 0.0
        %367 = vmatpush1.msra.mxu0 0.0
        %368 = vmatprep.subr.mxu0 0.0
        %369 = vmatpush1.msra.mxu0 0.0
        %370 = vmatprep.subr.mxu0 0.0
        %371 = vmatpush1.msra.mxu0 0.0
        %372 = vmatprep.subr.mxu0 0.0
        %373 = vmatpush1.msra.mxu0 0.0
        %374 = vmatprep.subr.mxu0 0.0
        %375 = vmatpush1.msra.mxu0 0.0
        %376 = vmatprep.mubr.f32.mxu0 0.0
        %377 = vmatmul.mubr.f32.gmra.mrb[0].mxu0 %v239
        %v378 = vpop.f32.mrb[0].mxu0
        %v379 = vadd.f32 0.0, %v378
        %v380 = vpop.f32.mrb[0].mxu0
        %v381 = vadd.f32 0.0, %v380
        %382 = vdwg.mxu0
        %383 = vmatprep.subr.mxu0 %v226
        %384 = vmatpush1.msra.mxu0 %v225
        %385 = vmatprep.subr.mxu0 0.0
        %386 = vmatpush1.msra.mxu0 0.0
        %387 = vmatprep.subr.mxu0 0.0
        %388 = vmatpush1.msra.mxu0 0.0
        %389 = vmatprep.subr.mxu0 0.0
        %390 = vmatpush1.msra.mxu0 0.0
        %391 = vmatprep.subr.mxu0 0.0
        %392 = vmatpush1.msra.mxu0 0.0
        %393 = vmatprep.subr.mxu0 0.0
        %394 = vmatpush1.msra.mxu0 0.0
        %395 = vmatprep.subr.mxu0 0.0
        %396 = vmatpush1.msra.mxu0 0.0
        %397 = vmatprep.subr.mxu0 0.0
        %398 = vmatpush1.msra.mxu0 0.0
        %399 = vmatprep.subr.mxu0 0.0
        %400 = vmatpush1.msra.mxu0 0.0
        %401 = vmatprep.subr.mxu0 0.0
        %402 = vmatpush1.msra.mxu0 0.0
        %403 = vmatprep.subr.mxu0 0.0
        %404 = vmatpush1.msra.mxu0 0.0
        %405 = vmatprep.subr.mxu0 0.0
        %406 = vmatpush1.msra.mxu0 0.0
        %407 = vmatprep.subr.mxu0 0.0
        %408 = vmatpush1.msra.mxu0 0.0
        %409 = vmatprep.subr.mxu0 0.0
        %410 = vmatpush1.msra.mxu0 0.0
        %411 = vmatprep.subr.mxu0 0.0
        %412 = vmatpush1.msra.mxu0 0.0
        %413 = vmatprep.subr.mxu0 0.0
        %414 = vmatpush1.msra.mxu0 0.0
        %415 = vmatprep.subr.mxu0 0.0
        %416 = vmatpush1.msra.mxu0 0.0
        %417 = vmatprep.subr.mxu0 0.0
        %418 = vmatpush1.msra.mxu0 0.0
        %419 = vmatprep.subr.mxu0 0.0
        %420 = vmatpush1.msra.mxu0 0.0
        %421 = vmatprep.subr.mxu0 0.0
        %422 = vmatpush1.msra.mxu0 0.0
        %423 = vmatprep.subr.mxu0 0.0
        %424 = vmatpush1.msra.mxu0 0.0
        %425 = vmatprep.subr.mxu0 0.0
        %426 = vmatpush1.msra.mxu0 0.0
        %427 = vmatprep.subr.mxu0 0.0
        %428 = vmatpush1.msra.mxu0 0.0
        %429 = vmatprep.subr.mxu0 0.0
        %430 = vmatpush1.msra.mxu0 0.0
        %431 = vmatprep.subr.mxu0 0.0
        %432 = vmatpush1.msra.mxu0 0.0
        %433 = vmatprep.subr.mxu0 0.0
        %434 = vmatpush1.msra.mxu0 0.0
        %435 = vmatprep.subr.mxu0 0.0
        %436 = vmatpush1.msra.mxu0 0.0
        %437 = vmatprep.subr.mxu0 0.0
        %438 = vmatpush1.msra.mxu0 0.0
        %439 = vmatprep.subr.mxu0 0.0
        %440 = vmatpush1.msra.mxu0 0.0
        %441 = vmatprep.subr.mxu0 0.0
        %442 = vmatpush1.msra.mxu0 0.0
        %443 = vmatprep.subr.mxu0 0.0
        %444 = vmatpush1.msra.mxu0 0.0
        %445 = vmatprep.subr.mxu0 0.0
        %446 = vmatpush1.msra.mxu0 0.0
        %447 = vmatprep.mubr.f32.mxu0 0.0
        %448 = vmatmul.mubr.f32.gmra.mrb[0].mxu0 %v239
        %v449 = vpop.f32.mrb[0].mxu0
        %v450 = vadd.f32 0.0, %v449
        %v451 = vpop.f32.mrb[0].mxu0
        %v452 = vadd.f32 0.0, %v451
        %453 = vdwg.mxu0
        %454 = vmatprep.subr.mxu0 %v228
        %455 = vmatpush1.msra.mxu0 %v227
        %456 = vmatprep.subr.mxu0 0.0
        %457 = vmatpush1.msra.mxu0 0.0
        %458 = vmatprep.subr.mxu0 0.0
        %459 = vmatpush1.msra.mxu0 0.0
        %460 = vmatprep.subr.mxu0 0.0
        %461 = vmatpush1.msra.mxu0 0.0
        %462 = vmatprep.subr.mxu0 0.0
        %463 = vmatpush1.msra.mxu0 0.0
        %464 = vmatprep.subr.mxu0 0.0
        %465 = vmatpush1.msra.mxu0 0.0
        %466 = vmatprep.subr.mxu0 0.0
        %467 = vmatpush1.msra.mxu0 0.0
        %468 = vmatprep.subr.mxu0 0.0
        %469 = vmatpush1.msra.mxu0 0.0
        %470 = vmatprep.subr.mxu0 0.0
        %471 = vmatpush1.msra.mxu0 0.0
        %472 = vmatprep.subr.mxu0 0.0
        %473 = vmatpush1.msra.mxu0 0.0
        %474 = vmatprep.subr.mxu0 0.0
        %475 = vmatpush1.msra.mxu0 0.0
        %476 = vmatprep.subr.mxu0 0.0
        %477 = vmatpush1.msra.mxu0 0.0
        %478 = vmatprep.subr.mxu0 0.0
        %479 = vmatpush1.msra.mxu0 0.0
        %480 = vmatprep.subr.mxu0 0.0
        %481 = vmatpush1.msra.mxu0 0.0
        %482 = vmatprep.subr.mxu0 0.0
        %483 = vmatpush1.msra.mxu0 0.0
        %484 = vmatprep.subr.mxu0 0.0
        %485 = vmatpush1.msra.mxu0 0.0
        %486 = vmatprep.subr.mxu0 0.0
        %487 = vmatpush1.msra.mxu0 0.0
        %488 = vmatprep.subr.mxu0 0.0
        %489 = vmatpush1.msra.mxu0 0.0
        %490 = vmatprep.subr.mxu0 0.0
        %491 = vmatpush1.msra.mxu0 0.0
        %492 = vmatprep.subr.mxu0 0.0
        %493 = vmatpush1.msra.mxu0 0.0
        %494 = vmatprep.subr.mxu0 0.0
        %495 = vmatpush1.msra.mxu0 0.0
        %496 = vmatprep.subr.mxu0 0.0
        %497 = vmatpush1.msra.mxu0 0.0
        %498 = vmatprep.subr.mxu0 0.0
        %499 = vmatpush1.msra.mxu0 0.0
        %500 = vmatprep.subr.mxu0 0.0
        %501 = vmatpush1.msra.mxu0 0.0
        %502 = vmatprep.subr.mxu0 0.0
        %503 = vmatpush1.msra.mxu0 0.0
        %504 = vmatprep.subr.mxu0 0.0
        %505 = vmatpush1.msra.mxu0 0.0
        %506 = vmatprep.subr.mxu0 0.0
        %507 = vmatpush1.msra.mxu0 0.0
        %508 = vmatprep.subr.mxu0 0.0
        %509 = vmatpush1.msra.mxu0 0.0
        %510 = vmatprep.subr.mxu0 0.0
        %511 = vmatpush1.msra.mxu0 0.0
        %512 = vmatprep.subr.mxu0 0.0
        %513 = vmatpush1.msra.mxu0 0.0
        %514 = vmatprep.subr.mxu0 0.0
        %515 = vmatpush1.msra.mxu0 0.0
        %516 = vmatprep.subr.mxu0 0.0
        %517 = vmatpush1.msra.mxu0 0.0
        %518 = vmatprep.mubr.f32.mxu0 0.0
        %519 = vmatmul.mubr.f32.gmra.mrb[0].mxu0 %v239
        %v520 = vpop.f32.mrb[0].mxu0
        %v521 = vadd.f32 0.0, %v520
        %v522 = vpop.f32.mrb[0].mxu0
        %v523 = vadd.f32 0.0, %v522
        %524 = vdwg.mxu0
        %525 = vmatprep.subr.mxu0 %v230
        %526 = vmatpush1.msra.mxu0 %v229
        %527 = vmatprep.subr.mxu0 0.0
        %528 = vmatpush1.msra.mxu0 0.0
        %529 = vmatprep.subr.mxu0 0.0
        %530 = vmatpush1.msra.mxu0 0.0
        %531 = vmatprep.subr.mxu0 0.0
        %532 = vmatpush1.msra.mxu0 0.0
        %533 = vmatprep.subr.mxu0 0.0
        %534 = vmatpush1.msra.mxu0 0.0
        %535 = vmatprep.subr.mxu0 0.0
        %536 = vmatpush1.msra.mxu0 0.0
        %537 = vmatprep.subr.mxu0 0.0
        %538 = vmatpush1.msra.mxu0 0.0
        %539 = vmatprep.subr.mxu0 0.0
        %540 = vmatpush1.msra.mxu0 0.0
        %541 = vmatprep.subr.mxu0 0.0
        %542 = vmatpush1.msra.mxu0 0.0
        %543 = vmatprep.subr.mxu0 0.0
        %544 = vmatpush1.msra.mxu0 0.0
        %545 = vmatprep.subr.mxu0 0.0
        %546 = vmatpush1.msra.mxu0 0.0
        %547 = vmatprep.subr.mxu0 0.0
        %548 = vmatpush1.msra.mxu0 0.0
        %549 = vmatprep.subr.mxu0 0.0
        %550 = vmatpush1.msra.mxu0 0.0
        %551 = vmatprep.subr.mxu0 0.0
        %552 = vmatpush1.msra.mxu0 0.0
        %553 = vmatprep.subr.mxu0 0.0
        %554 = vmatpush1.msra.mxu0 0.0
        %555 = vmatprep.subr.mxu0 0.0
        %556 = vmatpush1.msra.mxu0 0.0
        %557 = vmatprep.subr.mxu0 0.0
        %558 = vmatpush1.msra.mxu0 0.0
        %559 = vmatprep.subr.mxu0 0.0
        %560 = vmatpush1.msra.mxu0 0.0
        %561 = vmatprep.subr.mxu0 0.0
        %562 = vmatpush1.msra.mxu0 0.0
        %563 = vmatprep.subr.mxu0 0.0
        %564 = vmatpush1.msra.mxu0 0.0
        %565 = vmatprep.subr.mxu0 0.0
        %566 = vmatpush1.msra.mxu0 0.0
        %567 = vmatprep.subr.mxu0 0.0
        %568 = vmatpush1.msra.mxu0 0.0
        %569 = vmatprep.subr.mxu0 0.0
        %570 = vmatpush1.msra.mxu0 0.0
        %571 = vmatprep.subr.mxu0 0.0
        %572 = vmatpush1.msra.mxu0 0.0
        %573 = vmatprep.subr.mxu0 0.0
        %574 = vmatpush1.msra.mxu0 0.0
        %575 = vmatprep.subr.mxu0 0.0
        %576 = vmatpush1.msra.mxu0 0.0
        %577 = vmatprep.subr.mxu0 0.0
        %578 = vmatpush1.msra.mxu0 0.0
        %579 = vmatprep.subr.mxu0 0.0
        %580 = vmatpush1.msra.mxu0 0.0
        %581 = vmatprep.subr.mxu0 0.0
        %582 = vmatpush1.msra.mxu0 0.0
        %583 = vmatprep.subr.mxu0 0.0
        %584 = vmatpush1.msra.mxu0 0.0
        %585 = vmatprep.subr.mxu0 0.0
        %586 = vmatpush1.msra.mxu0 0.0
        %587 = vmatprep.subr.mxu0 0.0
        %588 = vmatpush1.msra.mxu0 0.0
        %589 = vmatprep.mubr.f32.mxu0 0.0
        %590 = vmatmul.mubr.f32.gmra.mrb[0].mxu0 %v239
        %v591 = vpop.f32.mrb[0].mxu0
        %v592 = vadd.f32 0.0, %v591
        %v593 = vpop.f32.mrb[0].mxu0
        %v594 = vadd.f32 0.0, %v593
        %595 = vdwg.mxu0
        %596 = vmatprep.subr.mxu0 %v232
        %597 = vmatpush1.msra.mxu0 %v231
        %598 = vmatprep.subr.mxu0 0.0
        %599 = vmatpush1.msra.mxu0 0.0
        %600 = vmatprep.subr.mxu0 0.0
        %601 = vmatpush1.msra.mxu0 0.0
        %602 = vmatprep.subr.mxu0 0.0
        %603 = vmatpush1.msra.mxu0 0.0
        %604 = vmatprep.subr.mxu0 0.0
        %605 = vmatpush1.msra.mxu0 0.0
        %606 = vmatprep.subr.mxu0 0.0
        %607 = vmatpush1.msra.mxu0 0.0
        %608 = vmatprep.subr.mxu0 0.0
        %609 = vmatpush1.msra.mxu0 0.0
        %610 = vmatprep.subr.mxu0 0.0
        %611 = vmatpush1.msra.mxu0 0.0
        %612 = vmatprep.subr.mxu0 0.0
        %613 = vmatpush1.msra.mxu0 0.0
        %614 = vmatprep.subr.mxu0 0.0
        %615 = vmatpush1.msra.mxu0 0.0
        %616 = vmatprep.subr.mxu0 0.0
        %617 = vmatpush1.msra.mxu0 0.0
        %618 = vmatprep.subr.mxu0 0.0
        %619 = vmatpush1.msra.mxu0 0.0
        %620 = vmatprep.subr.mxu0 0.0
        %621 = vmatpush1.msra.mxu0 0.0
        %622 = vmatprep.subr.mxu0 0.0
        %623 = vmatpush1.msra.mxu0 0.0
        %624 = vmatprep.subr.mxu0 0.0
        %625 = vmatpush1.msra.mxu0 0.0
        %626 = vmatprep.subr.mxu0 0.0
        %627 = vmatpush1.msra.mxu0 0.0
        %628 = vmatprep.subr.mxu0 0.0
        %629 = vmatpush1.msra.mxu0 0.0
        %630 = vmatprep.subr.mxu0 0.0
        %631 = vmatpush1.msra.mxu0 0.0
        %632 = vmatprep.subr.mxu0 0.0
        %633 = vmatpush1.msra.mxu0 0.0
        %634 = vmatprep.subr.mxu0 0.0
        %635 = vmatpush1.msra.mxu0 0.0
        %636 = vmatprep.subr.mxu0 0.0
        %637 = vmatpush1.msra.mxu0 0.0
        %638 = vmatprep.subr.mxu0 0.0
        %639 = vmatpush1.msra.mxu0 0.0
        %640 = vmatprep.subr.mxu0 0.0
        %641 = vmatpush1.msra.mxu0 0.0
        %642 = vmatprep.subr.mxu0 0.0
        %643 = vmatpush1.msra.mxu0 0.0
        %644 = vmatprep.subr.mxu0 0.0
        %645 = vmatpush1.msra.mxu0 0.0
        %646 = vmatprep.subr.mxu0 0.0
        %647 = vmatpush1.msra.mxu0 0.0
        %648 = vmatprep.subr.mxu0 0.0
        %649 = vmatpush1.msra.mxu0 0.0
        %650 = vmatprep.subr.mxu0 0.0
        %651 = vmatpush1.msra.mxu0 0.0
        %652 = vmatprep.subr.mxu0 0.0
        %653 = vmatpush1.msra.mxu0 0.0
        %654 = vmatprep.subr.mxu0 0.0
        %655 = vmatpush1.msra.mxu0 0.0
        %656 = vmatprep.subr.mxu0 0.0
        %657 = vmatpush1.msra.mxu0 0.0
        %658 = vmatprep.subr.mxu0 0.0
        %659 = vmatpush1.msra.mxu0 0.0
        %660 = vmatprep.mubr.f32.mxu0 0.0
        %661 = vmatmul.mubr.f32.gmra.mrb[0].mxu0 %v239
        %v662 = vpop.f32.mrb[0].mxu0
        %v663 = vadd.f32 0.0, %v662
        %v664 = vpop.f32.mrb[0].mxu0
        %v665 = vadd.f32 0.0, %v664
        %666 = vdwg.mxu0
        %667 = vmatprep.subr.mxu0 %v234
        %668 = vmatpush1.msra.mxu0 %v233
        %669 = vmatprep.subr.mxu0 0.0
        %670 = vmatpush1.msra.mxu0 0.0
        %671 = vmatprep.subr.mxu0 0.0
        %672 = vmatpush1.msra.mxu0 0.0
        %673 = vmatprep.subr.mxu0 0.0
        %674 = vmatpush1.msra.mxu0 0.0
        %675 = vmatprep.subr.mxu0 0.0
        %676 = vmatpush1.msra.mxu0 0.0
        %677 = vmatprep.subr.mxu0 0.0
        %678 = vmatpush1.msra.mxu0 0.0
        %679 = vmatprep.subr.mxu0 0.0
        %680 = vmatpush1.msra.mxu0 0.0
        %681 = vmatprep.subr.mxu0 0.0
        %682 = vmatpush1.msra.mxu0 0.0
        %683 = vmatprep.subr.mxu0 0.0
        %684 = vmatpush1.msra.mxu0 0.0
        %685 = vmatprep.subr.mxu0 0.0
        %686 = vmatpush1.msra.mxu0 0.0
        %687 = vmatprep.subr.mxu0 0.0
        %688 = vmatpush1.msra.mxu0 0.0
        %689 = vmatprep.subr.mxu0 0.0
        %690 = vmatpush1.msra.mxu0 0.0
        %691 = vmatprep.subr.mxu0 0.0
        %692 = vmatpush1.msra.mxu0 0.0
        %693 = vmatprep.subr.mxu0 0.0
        %694 = vmatpush1.msra.mxu0 0.0
        %695 = vmatprep.subr.mxu0 0.0
        %696 = vmatpush1.msra.mxu0 0.0
        %697 = vmatprep.subr.mxu0 0.0
        %698 = vmatpush1.msra.mxu0 0.0
        %699 = vmatprep.subr.mxu0 0.0
        %700 = vmatpush1.msra.mxu0 0.0
        %701 = vmatprep.subr.mxu0 0.0
        %702 = vmatpush1.msra.mxu0 0.0
        %703 = vmatprep.subr.mxu0 0.0
        %704 = vmatpush1.msra.mxu0 0.0
        %705 = vmatprep.subr.mxu0 0.0
        %706 = vmatpush1.msra.mxu0 0.0
        %707 = vmatprep.subr.mxu0 0.0
        %708 = vmatpush1.msra.mxu0 0.0
        %709 = vmatprep.subr.mxu0 0.0
        %710 = vmatpush1.msra.mxu0 0.0
        %711 = vmatprep.subr.mxu0 0.0
        %712 = vmatpush1.msra.mxu0 0.0
        %713 = vmatprep.subr.mxu0 0.0
        %714 = vmatpush1.msra.mxu0 0.0
        %715 = vmatprep.subr.mxu0 0.0
        %716 = vmatpush1.msra.mxu0 0.0
        %717 = vmatprep.subr.mxu0 0.0
        %718 = vmatpush1.msra.mxu0 0.0
        %719 = vmatprep.subr.mxu0 0.0
        %720 = vmatpush1.msra.mxu0 0.0
        %721 = vmatprep.subr.mxu0 0.0
        %722 = vmatpush1.msra.mxu0 0.0
        %723 = vmatprep.subr.mxu0 0.0
        %724 = vmatpush1.msra.mxu0 0.0
        %725 = vmatprep.subr.mxu0 0.0
        %726 = vmatpush1.msra.mxu0 0.0
        %727 = vmatprep.subr.mxu0 0.0
        %728 = vmatpush1.msra.mxu0 0.0
        %729 = vmatprep.subr.mxu0 0.0
        %730 = vmatpush1.msra.mxu0 0.0
        %731 = vmatprep.mubr.f32.mxu0 0.0
        %732 = vmatmul.mubr.f32.gmra.mrb[0].mxu0 %v239
        %v733 = vpop.f32.mrb[0].mxu0
        %v734 = vadd.f32 0.0, %v733
        %v735 = vpop.f32.mrb[0].mxu0
        %v736 = vadd.f32 0.0, %v735
        %737 = vdwg.mxu0
        %738 = vmatprep.subr.mxu0 %v236
        %739 = vmatpush1.msra.mxu0 %v235
        %740 = vmatprep.subr.mxu0 0.0
        %741 = vmatpush1.msra.mxu0 0.0
        %742 = vmatprep.subr.mxu0 0.0
        %743 = vmatpush1.msra.mxu0 0.0
        %744 = vmatprep.subr.mxu0 0.0
        %745 = vmatpush1.msra.mxu0 0.0
        %746 = vmatprep.subr.mxu0 0.0
        %747 = vmatpush1.msra.mxu0 0.0
        %748 = vmatprep.subr.mxu0 0.0
        %749 = vmatpush1.msra.mxu0 0.0
        %750 = vmatprep.subr.mxu0 0.0
        %751 = vmatpush1.msra.mxu0 0.0
        %752 = vmatprep.subr.mxu0 0.0
        %753 = vmatpush1.msra.mxu0 0.0
        %754 = vmatprep.subr.mxu0 0.0
        %755 = vmatpush1.msra.mxu0 0.0
        %756 = vmatprep.subr.mxu0 0.0
        %757 = vmatpush1.msra.mxu0 0.0
        %758 = vmatprep.subr.mxu0 0.0
        %759 = vmatpush1.msra.mxu0 0.0
        %760 = vmatprep.subr.mxu0 0.0
        %761 = vmatpush1.msra.mxu0 0.0
        %762 = vmatprep.subr.mxu0 0.0
        %763 = vmatpush1.msra.mxu0 0.0
        %764 = vmatprep.subr.mxu0 0.0
        %765 = vmatpush1.msra.mxu0 0.0
        %766 = vmatprep.subr.mxu0 0.0
        %767 = vmatpush1.msra.mxu0 0.0
        %768 = vmatprep.subr.mxu0 0.0
        %769 = vmatpush1.msra.mxu0 0.0
        %770 = vmatprep.subr.mxu0 0.0
        %771 = vmatpush1.msra.mxu0 0.0
        %772 = vmatprep.subr.mxu0 0.0
        %773 = vmatpush1.msra.mxu0 0.0
        %774 = vmatprep.subr.mxu0 0.0
        %775 = vmatpush1.msra.mxu0 0.0
        %776 = vmatprep.subr.mxu0 0.0
        %777 = vmatpush1.msra.mxu0 0.0
        %778 = vmatprep.subr.mxu0 0.0
        %779 = vmatpush1.msra.mxu0 0.0
        %780 = vmatprep.subr.mxu0 0.0
        %781 = vmatpush1.msra.mxu0 0.0
        %782 = vmatprep.subr.mxu0 0.0
        %783 = vmatpush1.msra.mxu0 0.0
        %784 = vmatprep.subr.mxu0 0.0
        %785 = vmatpush1.msra.mxu0 0.0
        %786 = vmatprep.subr.mxu0 0.0
        %787 = vmatpush1.msra.mxu0 0.0
        %788 = vmatprep.subr.mxu0 0.0
        %789 = vmatpush1.msra.mxu0 0.0
        %790 = vmatprep.subr.mxu0 0.0
        %791 = vmatpush1.msra.mxu0 0.0
        %792 = vmatprep.subr.mxu0 0.0
        %793 = vmatpush1.msra.mxu0 0.0
        %794 = vmatprep.subr.mxu0 0.0
        %795 = vmatpush1.msra.mxu0 0.0
        %796 = vmatprep.subr.mxu0 0.0
        %797 = vmatpush1.msra.mxu0 0.0
        %798 = vmatprep.subr.mxu0 0.0
        %799 = vmatpush1.msra.mxu0 0.0
        %800 = vmatprep.subr.mxu0 0.0
        %801 = vmatpush1.msra.mxu0 0.0
        %802 = vmatprep.mubr.f32.mxu0 0.0
        %803 = vmatmul.mubr.f32.gmra.mrb[0].mxu0 %v239
        %v804 = vpop.f32.mrb[0].mxu0
        %v805 = vadd.f32 0.0, %v804
        %v806 = vpop.f32.mrb[0].mxu0
        %v807 = vadd.f32 0.0, %v806
        %808 = vdwg.mxu0
        %v809 = vmax.f32 %v308, 0.0
        %v810 = vmax.f32 %v310, 0.0
        %v811 = vmax.f32 %v379, 0.0
        %v812 = vmax.f32 %v381, 0.0
        %v813 = vmax.f32 %v450, 0.0
        %v814 = vmax.f32 %v452, 0.0
        %v815 = vmax.f32 %v521, 0.0
        %v816 = vmax.f32 %v523, 0.0
        %v817 = vmax.f32 %v592, 0.0
        %v818 = vmax.f32 %v594, 0.0
        %v819 = vmax.f32 %v663, 0.0
        %v820 = vmax.f32 %v665, 0.0
        %v821 = vmax.f32 %v734, 0.0
        %v822 = vmax.f32 %v736, 0.0
        %v823 = vmax.f32 %v805, 0.0
        %v824 = vmax.f32 %v807, 0.0
        %v825 = vld [vmem:[%s2] sm:$0xf]
        %vm826 = vcmask 31744
        %v828 = vsel %vm826, %v825, 0
        %vm830 = vcmask 1043456
        %v832 = vsel %vm830, %v809, 0
        %v835 = vsel %vm830, %v810, 0
        %v838 = vsel %vm830, %v811, 0
        %v841 = vsel %vm830, %v812, 0
        %v844 = vsel %vm830, %v813, 0
        %v847 = vsel %vm830, %v814, 0
        %v850 = vsel %vm830, %v815, 0
        %v853 = vsel %vm830, %v816, 0
        %v856 = vsel %vm830, %v817, 0
        %v859 = vsel %vm830, %v818, 0
        %v862 = vsel %vm830, %v819, 0
        %v865 = vsel %vm830, %v820, 0
        %v868 = vsel %vm830, %v821, 0
        %v871 = vsel %vm830, %v822, 0
        %v874 = vsel %vm830, %v823, 0
        %v877 = vsel %vm830, %v824, 0
        %879 = vmatprep.subr.mxu0 %v835
        %880 = vmatpush1.msra.mxu0 %v832
        %881 = vmatprep.subr.mxu0 0.0
        %882 = vmatpush1.msra.mxu0 0.0
        %883 = vmatprep.subr.mxu0 0.0
        %884 = vmatpush1.msra.mxu0 0.0
        %885 = vmatprep.subr.mxu0 0.0
        %886 = vmatpush1.msra.mxu0 0.0
        %887 = vmatprep.subr.mxu0 0.0
        %888 = vmatpush1.msra.mxu0 0.0
        %889 = vmatprep.subr.mxu0 0.0
        %890 = vmatpush1.msra.mxu0 0.0
        %891 = vmatprep.subr.mxu0 0.0
        %892 = vmatpush1.msra.mxu0 0.0
        %893 = vmatprep.subr.mxu0 0.0
        %894 = vmatpush1.msra.mxu0 0.0
        %895 = vmatprep.subr.mxu0 0.0
        %896 = vmatpush1.msra.mxu0 0.0
        %897 = vmatprep.subr.mxu0 0.0
        %898 = vmatpush1.msra.mxu0 0.0
        %899 = vmatprep.subr.mxu0 0.0
        %900 = vmatpush1.msra.mxu0 0.0
        %901 = vmatprep.subr.mxu0 0.0
        %902 = vmatpush1.msra.mxu0 0.0
        %903 = vmatprep.subr.mxu0 0.0
        %904 = vmatpush1.msra.mxu0 0.0
        %905 = vmatprep.subr.mxu0 0.0
        %906 = vmatpush1.msra.mxu0 0.0
        %907 = vmatprep.subr.mxu0 0.0
        %908 = vmatpush1.msra.mxu0 0.0
        %909 = vmatprep.subr.mxu0 0.0
        %910 = vmatpush1.msra.mxu0 0.0
        %911 = vmatprep.subr.mxu0 0.0
        %912 = vmatpush1.msra.mxu0 0.0
        %913 = vmatprep.subr.mxu0 0.0
        %914 = vmatpush1.msra.mxu0 0.0
        %915 = vmatprep.subr.mxu0 0.0
        %916 = vmatpush1.msra.mxu0 0.0
        %917 = vmatprep.subr.mxu0 0.0
        %918 = vmatpush1.msra.mxu0 0.0
        %919 = vmatprep.subr.mxu0 0.0
        %920 = vmatpush1.msra.mxu0 0.0
        %921 = vmatprep.subr.mxu0 0.0
        %922 = vmatpush1.msra.mxu0 0.0
        %923 = vmatprep.subr.mxu0 0.0
        %924 = vmatpush1.msra.mxu0 0.0
        %925 = vmatprep.subr.mxu0 0.0
        %926 = vmatpush1.msra.mxu0 0.0
        %927 = vmatprep.subr.mxu0 0.0
        %928 = vmatpush1.msra.mxu0 0.0
        %929 = vmatprep.subr.mxu0 0.0
        %930 = vmatpush1.msra.mxu0 0.0
        %931 = vmatprep.subr.mxu0 0.0
        %932 = vmatpush1.msra.mxu0 0.0
        %933 = vmatprep.subr.mxu0 0.0
        %934 = vmatpush1.msra.mxu0 0.0
        %935 = vmatprep.subr.mxu0 0.0
        %936 = vmatpush1.msra.mxu0 0.0
        %937 = vmatprep.subr.mxu0 0.0
        %938 = vmatpush1.msra.mxu0 0.0
        %939 = vmatprep.subr.mxu0 0.0
        %940 = vmatpush1.msra.mxu0 0.0
        %941 = vmatprep.subr.mxu0 0.0
        %942 = vmatpush1.msra.mxu0 0.0
        %943 = vmatprep.mubr.f32.mxu0 0.0
        %944 = vmatmul.mubr.f32.gmra.mrb[0].mxu0 %v828
        %v945 = vpop.f32.mrb[0].mxu0
        %v946 = vadd.f32 0.0, %v945
        %v947 = vpop.f32.mrb[0].mxu0
        %v948 = vadd.f32 0.0, %v947
        %949 = vdwg.mxu0
        %950 = vmatprep.subr.mxu0 %v841
        %951 = vmatpush1.msra.mxu0 %v838
        %952 = vmatprep.subr.mxu0 0.0
        %953 = vmatpush1.msra.mxu0 0.0
        %954 = vmatprep.subr.mxu0 0.0
        %955 = vmatpush1.msra.mxu0 0.0
        %956 = vmatprep.subr.mxu0 0.0
        %957 = vmatpush1.msra.mxu0 0.0
        %958 = vmatprep.subr.mxu0 0.0
        %959 = vmatpush1.msra.mxu0 0.0
        %960 = vmatprep.subr.mxu0 0.0
        %961 = vmatpush1.msra.mxu0 0.0
        %962 = vmatprep.subr.mxu0 0.0
        %963 = vmatpush1.msra.mxu0 0.0
        %964 = vmatprep.subr.mxu0 0.0
        %965 = vmatpush1.msra.mxu0 0.0
        %966 = vmatprep.subr.mxu0 0.0
        %967 = vmatpush1.msra.mxu0 0.0
        %968 = vmatprep.subr.mxu0 0.0
        %969 = vmatpush1.msra.mxu0 0.0
        %970 = vmatprep.subr.mxu0 0.0
        %971 = vmatpush1.msra.mxu0 0.0
        %972 = vmatprep.subr.mxu0 0.0
        %973 = vmatpush1.msra.mxu0 0.0
        %974 = vmatprep.subr.mxu0 0.0
        %975 = vmatpush1.msra.mxu0 0.0
        %976 = vmatprep.subr.mxu0 0.0
        %977 = vmatpush1.msra.mxu0 0.0
        %978 = vmatprep.subr.mxu0 0.0
        %979 = vmatpush1.msra.mxu0 0.0
        %980 = vmatprep.subr.mxu0 0.0
        %981 = vmatpush1.msra.mxu0 0.0
        %982 = vmatprep.subr.mxu0 0.0
        %983 = vmatpush1.msra.mxu0 0.0
        %984 = vmatprep.subr.mxu0 0.0
        %985 = vmatpush1.msra.mxu0 0.0
        %986 = vmatprep.subr.mxu0 0.0
        %987 = vmatpush1.msra.mxu0 0.0
        %988 = vmatprep.subr.mxu0 0.0
        %989 = vmatpush1.msra.mxu0 0.0
        %990 = vmatprep.subr.mxu0 0.0
        %991 = vmatpush1.msra.mxu0 0.0
        %992 = vmatprep.subr.mxu0 0.0
        %993 = vmatpush1.msra.mxu0 0.0
        %994 = vmatprep.subr.mxu0 0.0
        %995 = vmatpush1.msra.mxu0 0.0
        %996 = vmatprep.subr.mxu0 0.0
        %997 = vmatpush1.msra.mxu0 0.0
        %998 = vmatprep.subr.mxu0 0.0
        %999 = vmatpush1.msra.mxu0 0.0
        %1000 = vmatprep.subr.mxu0 0.0
        %1001 = vmatpush1.msra.mxu0 0.0
        %1002 = vmatprep.subr.mxu0 0.0
        %1003 = vmatpush1.msra.mxu0 0.0
        %1004 = vmatprep.subr.mxu0 0.0
        %1005 = vmatpush1.msra.mxu0 0.0
        %1006 = vmatprep.subr.mxu0 0.0
        %1007 = vmatpush1.msra.mxu0 0.0
        %1008 = vmatprep.subr.mxu0 0.0
        %1009 = vmatpush1.msra.mxu0 0.0
        %1010 = vmatprep.subr.mxu0 0.0
        %1011 = vmatpush1.msra.mxu0 0.0
        %1012 = vmatprep.subr.mxu0 0.0
        %1013 = vmatpush1.msra.mxu0 0.0
        %1014 = vmatprep.mubr.f32.mxu0 0.0
        %1015 = vmatmul.mubr.f32.gmra.mrb[0].mxu0 %v828
        %v1016 = vpop.f32.mrb[0].mxu0
        %v1017 = vadd.f32 0.0, %v1016
        %v1018 = vpop.f32.mrb[0].mxu0
        %v1019 = vadd.f32 0.0, %v1018
        %1020 = vdwg.mxu0
        %1021 = vmatprep.subr.mxu0 %v847
        %1022 = vmatpush1.msra.mxu0 %v844
        %1023 = vmatprep.subr.mxu0 0.0
        %1024 = vmatpush1.msra.mxu0 0.0
        %1025 = vmatprep.subr.mxu0 0.0
        %1026 = vmatpush1.msra.mxu0 0.0
        %1027 = vmatprep.subr.mxu0 0.0
        %1028 = vmatpush1.msra.mxu0 0.0
        %1029 = vmatprep.subr.mxu0 0.0
        %1030 = vmatpush1.msra.mxu0 0.0
        %1031 = vmatprep.subr.mxu0 0.0
        %1032 = vmatpush1.msra.mxu0 0.0
        %1033 = vmatprep.subr.mxu0 0.0
        %1034 = vmatpush1.msra.mxu0 0.0
        %1035 = vmatprep.subr.mxu0 0.0
        %1036 = vmatpush1.msra.mxu0 0.0
        %1037 = vmatprep.subr.mxu0 0.0
        %1038 = vmatpush1.msra.mxu0 0.0
        %1039 = vmatprep.subr.mxu0 0.0
        %1040 = vmatpush1.msra.mxu0 0.0
        %1041 = vmatprep.subr.mxu0 0.0
        %1042 = vmatpush1.msra.mxu0 0.0
        %1043 = vmatprep.subr.mxu0 0.0
        %1044 = vmatpush1.msra.mxu0 0.0
        %1045 = vmatprep.subr.mxu0 0.0
        %1046 = vmatpush1.msra.mxu0 0.0
        %1047 = vmatprep.subr.mxu0 0.0
        %1048 = vmatpush1.msra.mxu0 0.0
        %1049 = vmatprep.subr.mxu0 0.0
        %1050 = vmatpush1.msra.mxu0 0.0
        %1051 = vmatprep.subr.mxu0 0.0
        %1052 = vmatpush1.msra.mxu0 0.0
        %1053 = vmatprep.subr.mxu0 0.0
        %1054 = vmatpush1.msra.mxu0 0.0
        %1055 = vmatprep.subr.mxu0 0.0
        %1056 = vmatpush1.msra.mxu0 0.0
        %1057 = vmatprep.subr.mxu0 0.0
        %1058 = vmatpush1.msra.mxu0 0.0
        %1059 = vmatprep.subr.mxu0 0.0
        %1060 = vmatpush1.msra.mxu0 0.0
        %1061 = vmatprep.subr.mxu0 0.0
        %1062 = vmatpush1.msra.mxu0 0.0
        %1063 = vmatprep.subr.mxu0 0.0
        %1064 = vmatpush1.msra.mxu0 0.0
        %1065 = vmatprep.subr.mxu0 0.0
        %1066 = vmatpush1.msra.mxu0 0.0
        %1067 = vmatprep.subr.mxu0 0.0
        %1068 = vmatpush1.msra.mxu0 0.0
        %1069 = vmatprep.subr.mxu0 0.0
        %1070 = vmatpush1.msra.mxu0 0.0
        %1071 = vmatprep.subr.mxu0 0.0
        %1072 = vmatpush1.msra.mxu0 0.0
        %1073 = vmatprep.subr.mxu0 0.0
        %1074 = vmatpush1.msra.mxu0 0.0
        %1075 = vmatprep.subr.mxu0 0.0
        %1076 = vmatpush1.msra.mxu0 0.0
        %1077 = vmatprep.subr.mxu0 0.0
        %1078 = vmatpush1.msra.mxu0 0.0
        %1079 = vmatprep.subr.mxu0 0.0
        %1080 = vmatpush1.msra.mxu0 0.0
        %1081 = vmatprep.subr.mxu0 0.0
        %1082 = vmatpush1.msra.mxu0 0.0
        %1083 = vmatprep.subr.mxu0 0.0
        %1084 = vmatpush1.msra.mxu0 0.0
        %1085 = vmatprep.mubr.f32.mxu0 0.0
        %1086 = vmatmul.mubr.f32.gmra.mrb[0].mxu0 %v828
        %v1087 = vpop.f32.mrb[0].mxu0
        %v1088 = vadd.f32 0.0, %v1087
        %v1089 = vpop.f32.mrb[0].mxu0
        %v1090 = vadd.f32 0.0, %v1089
        %1091 = vdwg.mxu0
        %1092 = vmatprep.subr.mxu0 %v853
        %1093 = vmatpush1.msra.mxu0 %v850
        %1094 = vmatprep.subr.mxu0 0.0
        %1095 = vmatpush1.msra.mxu0 0.0
        %1096 = vmatprep.subr.mxu0 0.0
        %1097 = vmatpush1.msra.mxu0 0.0
        %1098 = vmatprep.subr.mxu0 0.0
        %1099 = vmatpush1.msra.mxu0 0.0
        %1100 = vmatprep.subr.mxu0 0.0
        %1101 = vmatpush1.msra.mxu0 0.0
        %1102 = vmatprep.subr.mxu0 0.0
        %1103 = vmatpush1.msra.mxu0 0.0
        %1104 = vmatprep.subr.mxu0 0.0
        %1105 = vmatpush1.msra.mxu0 0.0
        %1106 = vmatprep.subr.mxu0 0.0
        %1107 = vmatpush1.msra.mxu0 0.0
        %1108 = vmatprep.subr.mxu0 0.0
        %1109 = vmatpush1.msra.mxu0 0.0
        %1110 = vmatprep.subr.mxu0 0.0
        %1111 = vmatpush1.msra.mxu0 0.0
        %1112 = vmatprep.subr.mxu0 0.0
        %1113 = vmatpush1.msra.mxu0 0.0
        %1114 = vmatprep.subr.mxu0 0.0
        %1115 = vmatpush1.msra.mxu0 0.0
        %1116 = vmatprep.subr.mxu0 0.0
        %1117 = vmatpush1.msra.mxu0 0.0
        %1118 = vmatprep.subr.mxu0 0.0
        %1119 = vmatpush1.msra.mxu0 0.0
        %1120 = vmatprep.subr.mxu0 0.0
        %1121 = vmatpush1.msra.mxu0 0.0
        %1122 = vmatprep.subr.mxu0 0.0
        %1123 = vmatpush1.msra.mxu0 0.0
        %1124 = vmatprep.subr.mxu0 0.0
        %1125 = vmatpush1.msra.mxu0 0.0
        %1126 = vmatprep.subr.mxu0 0.0
        %1127 = vmatpush1.msra.mxu0 0.0
        %1128 = vmatprep.subr.mxu0 0.0
        %1129 = vmatpush1.msra.mxu0 0.0
        %1130 = vmatprep.subr.mxu0 0.0
        %1131 = vmatpush1.msra.mxu0 0.0
        %1132 = vmatprep.subr.mxu0 0.0
        %1133 = vmatpush1.msra.mxu0 0.0
        %1134 = vmatprep.subr.mxu0 0.0
        %1135 = vmatpush1.msra.mxu0 0.0
        %1136 = vmatprep.subr.mxu0 0.0
        %1137 = vmatpush1.msra.mxu0 0.0
        %1138 = vmatprep.subr.mxu0 0.0
        %1139 = vmatpush1.msra.mxu0 0.0
        %1140 = vmatprep.subr.mxu0 0.0
        %1141 = vmatpush1.msra.mxu0 0.0
        %1142 = vmatprep.subr.mxu0 0.0
        %1143 = vmatpush1.msra.mxu0 0.0
        %1144 = vmatprep.subr.mxu0 0.0
        %1145 = vmatpush1.msra.mxu0 0.0
        %1146 = vmatprep.subr.mxu0 0.0
        %1147 = vmatpush1.msra.mxu0 0.0
        %1148 = vmatprep.subr.mxu0 0.0
        %1149 = vmatpush1.msra.mxu0 0.0
        %1150 = vmatprep.subr.mxu0 0.0
        %1151 = vmatpush1.msra.mxu0 0.0
        %1152 = vmatprep.subr.mxu0 0.0
        %1153 = vmatpush1.msra.mxu0 0.0
        %1154 = vmatprep.subr.mxu0 0.0
        %1155 = vmatpush1.msra.mxu0 0.0
        %1156 = vmatprep.mubr.f32.mxu0 0.0
        %1157 = vmatmul.mubr.f32.gmra.mrb[0].mxu0 %v828
        %v1158 = vpop.f32.mrb[0].mxu0
        %v1159 = vadd.f32 0.0, %v1158
        %v1160 = vpop.f32.mrb[0].mxu0
        %v1161 = vadd.f32 0.0, %v1160
        %1162 = vdwg.mxu0
        %1163 = vmatprep.subr.mxu0 %v859
        %1164 = vmatpush1.msra.mxu0 %v856
        %1165 = vmatprep.subr.mxu0 0.0
        %1166 = vmatpush1.msra.mxu0 0.0
        %1167 = vmatprep.subr.mxu0 0.0
        %1168 = vmatpush1.msra.mxu0 0.0
        %1169 = vmatprep.subr.mxu0 0.0
        %1170 = vmatpush1.msra.mxu0 0.0
        %1171 = vmatprep.subr.mxu0 0.0
        %1172 = vmatpush1.msra.mxu0 0.0
        %1173 = vmatprep.subr.mxu0 0.0
        %1174 = vmatpush1.msra.mxu0 0.0
        %1175 = vmatprep.subr.mxu0 0.0
        %1176 = vmatpush1.msra.mxu0 0.0
        %1177 = vmatprep.subr.mxu0 0.0
        %1178 = vmatpush1.msra.mxu0 0.0
        %1179 = vmatprep.subr.mxu0 0.0
        %1180 = vmatpush1.msra.mxu0 0.0
        %1181 = vmatprep.subr.mxu0 0.0
        %1182 = vmatpush1.msra.mxu0 0.0
        %1183 = vmatprep.subr.mxu0 0.0
        %1184 = vmatpush1.msra.mxu0 0.0
        %1185 = vmatprep.subr.mxu0 0.0
        %1186 = vmatpush1.msra.mxu0 0.0
        %1187 = vmatprep.subr.mxu0 0.0
        %1188 = vmatpush1.msra.mxu0 0.0
        %1189 = vmatprep.subr.mxu0 0.0
        %1190 = vmatpush1.msra.mxu0 0.0
        %1191 = vmatprep.subr.mxu0 0.0
        %1192 = vmatpush1.msra.mxu0 0.0
        %1193 = vmatprep.subr.mxu0 0.0
        %1194 = vmatpush1.msra.mxu0 0.0
        %1195 = vmatprep.subr.mxu0 0.0
        %1196 = vmatpush1.msra.mxu0 0.0
        %1197 = vmatprep.subr.mxu0 0.0
        %1198 = vmatpush1.msra.mxu0 0.0
        %1199 = vmatprep.subr.mxu0 0.0
        %1200 = vmatpush1.msra.mxu0 0.0
        %1201 = vmatprep.subr.mxu0 0.0
        %1202 = vmatpush1.msra.mxu0 0.0
        %1203 = vmatprep.subr.mxu0 0.0
        %1204 = vmatpush1.msra.mxu0 0.0
        %1205 = vmatprep.subr.mxu0 0.0
        %1206 = vmatpush1.msra.mxu0 0.0
        %1207 = vmatprep.subr.mxu0 0.0
        %1208 = vmatpush1.msra.mxu0 0.0
        %1209 = vmatprep.subr.mxu0 0.0
        %1210 = vmatpush1.msra.mxu0 0.0
        %1211 = vmatprep.subr.mxu0 0.0
        %1212 = vmatpush1.msra.mxu0 0.0
        %1213 = vmatprep.subr.mxu0 0.0
        %1214 = vmatpush1.msra.mxu0 0.0
        %1215 = vmatprep.subr.mxu0 0.0
        %1216 = vmatpush1.msra.mxu0 0.0
        %1217 = vmatprep.subr.mxu0 0.0
        %1218 = vmatpush1.msra.mxu0 0.0
        %1219 = vmatprep.subr.mxu0 0.0
        %1220 = vmatpush1.msra.mxu0 0.0
        %1221 = vmatprep.subr.mxu0 0.0
        %1222 = vmatpush1.msra.mxu0 0.0
        %1223 = vmatprep.subr.mxu0 0.0
        %1224 = vmatpush1.msra.mxu0 0.0
        %1225 = vmatprep.subr.mxu0 0.0
        %1226 = vmatpush1.msra.mxu0 0.0
        %1227 = vmatprep.mubr.f32.mxu0 0.0
        %1228 = vmatmul.mubr.f32.gmra.mrb[0].mxu0 %v828
        %v1229 = vpop.f32.mrb[0].mxu0
        %v1230 = vadd.f32 0.0, %v1229
        %v1231 = vpop.f32.mrb[0].mxu0
        %v1232 = vadd.f32 0.0, %v1231
        %1233 = vdwg.mxu0
        %1234 = vmatprep.subr.mxu0 %v865
        %1235 = vmatpush1.msra.mxu0 %v862
        %1236 = vmatprep.subr.mxu0 0.0
        %1237 = vmatpush1.msra.mxu0 0.0
        %1238 = vmatprep.subr.mxu0 0.0
        %1239 = vmatpush1.msra.mxu0 0.0
        %1240 = vmatprep.subr.mxu0 0.0
        %1241 = vmatpush1.msra.mxu0 0.0
        %1242 = vmatprep.subr.mxu0 0.0
        %1243 = vmatpush1.msra.mxu0 0.0
        %1244 = vmatprep.subr.mxu0 0.0
        %1245 = vmatpush1.msra.mxu0 0.0
        %1246 = vmatprep.subr.mxu0 0.0
        %1247 = vmatpush1.msra.mxu0 0.0
        %1248 = vmatprep.subr.mxu0 0.0
        %1249 = vmatpush1.msra.mxu0 0.0
        %1250 = vmatprep.subr.mxu0 0.0
        %1251 = vmatpush1.msra.mxu0 0.0
        %1252 = vmatprep.subr.mxu0 0.0
        %1253 = vmatpush1.msra.mxu0 0.0
        %1254 = vmatprep.subr.mxu0 0.0
        %1255 = vmatpush1.msra.mxu0 0.0
        %1256 = vmatprep.subr.mxu0 0.0
        %1257 = vmatpush1.msra.mxu0 0.0
        %1258 = vmatprep.subr.mxu0 0.0
        %1259 = vmatpush1.msra.mxu0 0.0
        %1260 = vmatprep.subr.mxu0 0.0
        %1261 = vmatpush1.msra.mxu0 0.0
        %1262 = vmatprep.subr.mxu0 0.0
        %1263 = vmatpush1.msra.mxu0 0.0
        %1264 = vmatprep.subr.mxu0 0.0
        %1265 = vmatpush1.msra.mxu0 0.0
        %1266 = vmatprep.subr.mxu0 0.0
        %1267 = vmatpush1.msra.mxu0 0.0
        %1268 = vmatprep.subr.mxu0 0.0
        %1269 = vmatpush1.msra.mxu0 0.0
        %1270 = vmatprep.subr.mxu0 0.0
        %1271 = vmatpush1.msra.mxu0 0.0
        %1272 = vmatprep.subr.mxu0 0.0
        %1273 = vmatpush1.msra.mxu0 0.0
        %1274 = vmatprep.subr.mxu0 0.0
        %1275 = vmatpush1.msra.mxu0 0.0
        %1276 = vmatprep.subr.mxu0 0.0
        %1277 = vmatpush1.msra.mxu0 0.0
        %1278 = vmatprep.subr.mxu0 0.0
        %1279 = vmatpush1.msra.mxu0 0.0
        %1280 = vmatprep.subr.mxu0 0.0
        %1281 = vmatpush1.msra.mxu0 0.0
        %1282 = vmatprep.subr.mxu0 0.0
        %1283 = vmatpush1.msra.mxu0 0.0
        %1284 = vmatprep.subr.mxu0 0.0
        %1285 = vmatpush1.msra.mxu0 0.0
        %1286 = vmatprep.subr.mxu0 0.0
        %1287 = vmatpush1.msra.mxu0 0.0
        %1288 = vmatprep.subr.mxu0 0.0
        %1289 = vmatpush1.msra.mxu0 0.0
        %1290 = vmatprep.subr.mxu0 0.0
        %1291 = vmatpush1.msra.mxu0 0.0
        %1292 = vmatprep.subr.mxu0 0.0
        %1293 = vmatpush1.msra.mxu0 0.0
        %1294 = vmatprep.subr.mxu0 0.0
        %1295 = vmatpush1.msra.mxu0 0.0
        %1296 = vmatprep.subr.mxu0 0.0
        %1297 = vmatpush1.msra.mxu0 0.0
        %1298 = vmatprep.mubr.f32.mxu0 0.0
        %1299 = vmatmul.mubr.f32.gmra.mrb[0].mxu0 %v828
        %v1300 = vpop.f32.mrb[0].mxu0
        %v1301 = vadd.f32 0.0, %v1300
        %v1302 = vpop.f32.mrb[0].mxu0
        %v1303 = vadd.f32 0.0, %v1302
        %1304 = vdwg.mxu0
        %1305 = vmatprep.subr.mxu0 %v871
        %1306 = vmatpush1.msra.mxu0 %v868
        %1307 = vmatprep.subr.mxu0 0.0
        %1308 = vmatpush1.msra.mxu0 0.0
        %1309 = vmatprep.subr.mxu0 0.0
        %1310 = vmatpush1.msra.mxu0 0.0
        %1311 = vmatprep.subr.mxu0 0.0
        %1312 = vmatpush1.msra.mxu0 0.0
        %1313 = vmatprep.subr.mxu0 0.0
        %1314 = vmatpush1.msra.mxu0 0.0
        %1315 = vmatprep.subr.mxu0 0.0
        %1316 = vmatpush1.msra.mxu0 0.0
        %1317 = vmatprep.subr.mxu0 0.0
        %1318 = vmatpush1.msra.mxu0 0.0
        %1319 = vmatprep.subr.mxu0 0.0
        %1320 = vmatpush1.msra.mxu0 0.0
        %1321 = vmatprep.subr.mxu0 0.0
        %1322 = vmatpush1.msra.mxu0 0.0
        %1323 = vmatprep.subr.mxu0 0.0
        %1324 = vmatpush1.msra.mxu0 0.0
        %1325 = vmatprep.subr.mxu0 0.0
        %1326 = vmatpush1.msra.mxu0 0.0
        %1327 = vmatprep.subr.mxu0 0.0
        %1328 = vmatpush1.msra.mxu0 0.0
        %1329 = vmatprep.subr.mxu0 0.0
        %1330 = vmatpush1.msra.mxu0 0.0
        %1331 = vmatprep.subr.mxu0 0.0
        %1332 = vmatpush1.msra.mxu0 0.0
        %1333 = vmatprep.subr.mxu0 0.0
        %1334 = vmatpush1.msra.mxu0 0.0
        %1335 = vmatprep.subr.mxu0 0.0
        %1336 = vmatpush1.msra.mxu0 0.0
        %1337 = vmatprep.subr.mxu0 0.0
        %1338 = vmatpush1.msra.mxu0 0.0
        %1339 = vmatprep.subr.mxu0 0.0
        %1340 = vmatpush1.msra.mxu0 0.0
        %1341 = vmatprep.subr.mxu0 0.0
        %1342 = vmatpush1.msra.mxu0 0.0
        %1343 = vmatprep.subr.mxu0 0.0
        %1344 = vmatpush1.msra.mxu0 0.0
        %1345 = vmatprep.subr.mxu0 0.0
        %1346 = vmatpush1.msra.mxu0 0.0
        %1347 = vmatprep.subr.mxu0 0.0
        %1348 = vmatpush1.msra.mxu0 0.0
        %1349 = vmatprep.subr.mxu0 0.0
        %1350 = vmatpush1.msra.mxu0 0.0
        %1351 = vmatprep.subr.mxu0 0.0
        %1352 = vmatpush1.msra.mxu0 0.0
        %1353 = vmatprep.subr.mxu0 0.0
        %1354 = vmatpush1.msra.mxu0 0.0
        %1355 = vmatprep.subr.mxu0 0.0
        %1356 = vmatpush1.msra.mxu0 0.0
        %1357 = vmatprep.subr.mxu0 0.0
        %1358 = vmatpush1.msra.mxu0 0.0
        %1359 = vmatprep.subr.mxu0 0.0
        %1360 = vmatpush1.msra.mxu0 0.0
        %1361 = vmatprep.subr.mxu0 0.0
        %1362 = vmatpush1.msra.mxu0 0.0
        %1363 = vmatprep.subr.mxu0 0.0
        %1364 = vmatpush1.msra.mxu0 0.0
        %1365 = vmatprep.subr.mxu0 0.0
        %1366 = vmatpush1.msra.mxu0 0.0
        %1367 = vmatprep.subr.mxu0 0.0
        %1368 = vmatpush1.msra.mxu0 0.0
        %1369 = vmatprep.mubr.f32.mxu0 0.0
        %1370 = vmatmul.mubr.f32.gmra.mrb[0].mxu0 %v828
        %v1371 = vpop.f32.mrb[0].mxu0
        %v1372 = vadd.f32 0.0, %v1371
        %v1373 = vpop.f32.mrb[0].mxu0
        %v1374 = vadd.f32 0.0, %v1373
        %1375 = vdwg.mxu0
        %1376 = vmatprep.subr.mxu0 %v877
        %1377 = vmatpush1.msra.mxu0 %v874
        %1378 = vmatprep.subr.mxu0 0.0
        %1379 = vmatpush1.msra.mxu0 0.0
        %1380 = vmatprep.subr.mxu0 0.0
        %1381 = vmatpush1.msra.mxu0 0.0
        %1382 = vmatprep.subr.mxu0 0.0
        %1383 = vmatpush1.msra.mxu0 0.0
        %1384 = vmatprep.subr.mxu0 0.0
        %1385 = vmatpush1.msra.mxu0 0.0
        %1386 = vmatprep.subr.mxu0 0.0
        %1387 = vmatpush1.msra.mxu0 0.0
        %1388 = vmatprep.subr.mxu0 0.0
        %1389 = vmatpush1.msra.mxu0 0.0
        %1390 = vmatprep.subr.mxu0 0.0
        %1391 = vmatpush1.msra.mxu0 0.0
        %1392 = vmatprep.subr.mxu0 0.0
        %1393 = vmatpush1.msra.mxu0 0.0
        %1394 = vmatprep.subr.mxu0 0.0
        %1395 = vmatpush1.msra.mxu0 0.0
        %1396 = vmatprep.subr.mxu0 0.0
        %1397 = vmatpush1.msra.mxu0 0.0
        %1398 = vmatprep.subr.mxu0 0.0
        %1399 = vmatpush1.msra.mxu0 0.0
        %1400 = vmatprep.subr.mxu0 0.0
        %1401 = vmatpush1.msra.mxu0 0.0
        %1402 = vmatprep.subr.mxu0 0.0
        %1403 = vmatpush1.msra.mxu0 0.0
        %1404 = vmatprep.subr.mxu0 0.0
        %1405 = vmatpush1.msra.mxu0 0.0
        %1406 = vmatprep.subr.mxu0 0.0
        %1407 = vmatpush1.msra.mxu0 0.0
        %1408 = vmatprep.subr.mxu0 0.0
        %1409 = vmatpush1.msra.mxu0 0.0
        %1410 = vmatprep.subr.mxu0 0.0
        %1411 = vmatpush1.msra.mxu0 0.0
        %1412 = vmatprep.subr.mxu0 0.0
        %1413 = vmatpush1.msra.mxu0 0.0
        %1414 = vmatprep.subr.mxu0 0.0
        %1415 = vmatpush1.msra.mxu0 0.0
        %1416 = vmatprep.subr.mxu0 0.0
        %1417 = vmatpush1.msra.mxu0 0.0
        %1418 = vmatprep.subr.mxu0 0.0
        %1419 = vmatpush1.msra.mxu0 0.0
        %1420 = vmatprep.subr.mxu0 0.0
        %1421 = vmatpush1.msra.mxu0 0.0
        %1422 = vmatprep.subr.mxu0 0.0
        %1423 = vmatpush1.msra.mxu0 0.0
        %1424 = vmatprep.subr.mxu0 0.0
        %1425 = vmatpush1.msra.mxu0 0.0
        %1426 = vmatprep.subr.mxu0 0.0
        %1427 = vmatpush1.msra.mxu0 0.0
        %1428 = vmatprep.subr.mxu0 0.0
        %1429 = vmatpush1.msra.mxu0 0.0
        %1430 = vmatprep.subr.mxu0 0.0
        %1431 = vmatpush1.msra.mxu0 0.0
        %1432 = vmatprep.subr.mxu0 0.0
        %1433 = vmatpush1.msra.mxu0 0.0
        %1434 = vmatprep.subr.mxu0 0.0
        %1435 = vmatpush1.msra.mxu0 0.0
        %1436 = vmatprep.subr.mxu0 0.0
        %1437 = vmatpush1.msra.mxu0 0.0
        %1438 = vmatprep.subr.mxu0 0.0
        %1439 = vmatpush1.msra.mxu0 0.0
        %1440 = vmatprep.mubr.f32.mxu0 0.0
        %1441 = vmatmul.mubr.f32.gmra.mrb[0].mxu0 %v828
        %v1442 = vpop.f32.mrb[0].mxu0
        %v1443 = vadd.f32 0.0, %v1442
        %v1444 = vpop.f32.mrb[0].mxu0
        %v1445 = vadd.f32 0.0, %v1444
        %1446 = vdwg.mxu0
        %v1447 = vxor.u32 %v946, 2147483648
        %v1448 = vxor.u32 %v948, 2147483648
        %v1449 = vxor.u32 %v1017, 2147483648
        %v1450 = vxor.u32 %v1019, 2147483648
        %v1451 = vxor.u32 %v1088, 2147483648
        %v1452 = vxor.u32 %v1090, 2147483648
        %v1453 = vxor.u32 %v1159, 2147483648
        %v1454 = vxor.u32 %v1161, 2147483648
        %v1455 = vxor.u32 %v1230, 2147483648
        %v1456 = vxor.u32 %v1232, 2147483648
        %v1457 = vxor.u32 %v1301, 2147483648
        %v1458 = vxor.u32 %v1303, 2147483648
        %v1459 = vxor.u32 %v1372, 2147483648
        %v1460 = vxor.u32 %v1374, 2147483648
        %v1461 = vxor.u32 %v1443, 2147483648
        %v1462 = vxor.u32 %v1445, 2147483648
        %v1463 = vmul.f32 %v1447, 1.442695
        %v1464 = vpow.pop %v1463
        %v1465 = vmul.f32 %v1448, 1.442695
        %v1466 = vpow.pop %v1465
        %v1467 = vmul.f32 %v1449, 1.442695
        %v1468 = vpow.pop %v1467
        %v1469 = vmul.f32 %v1450, 1.442695
        %v1470 = vpow.pop %v1469
        %v1471 = vmul.f32 %v1451, 1.442695
        %v1472 = vpow.pop %v1471
        %v1473 = vmul.f32 %v1452, 1.442695
        %v1474 = vpow.pop %v1473
        %v1475 = vmul.f32 %v1453, 1.442695
        %v1476 = vpow.pop %v1475
        %v1477 = vmul.f32 %v1454, 1.442695
        %v1478 = vpow.pop %v1477
        %v1479 = vmul.f32 %v1455, 1.442695
        %v1480 = vpow.pop %v1479
        %v1481 = vmul.f32 %v1456, 1.442695
        %v1482 = vpow.pop %v1481
        %v1483 = vmul.f32 %v1457, 1.442695
        %v1484 = vpow.pop %v1483
        %v1485 = vmul.f32 %v1458, 1.442695
        %v1486 = vpow.pop %v1485
        %v1487 = vmul.f32 %v1459, 1.442695
        %v1488 = vpow.pop %v1487
        %v1489 = vmul.f32 %v1460, 1.442695
        %v1490 = vpow.pop %v1489
        %v1491 = vmul.f32 %v1461, 1.442695
        %v1492 = vpow.pop %v1491
        %v1493 = vmul.f32 %v1462, 1.442695
        %v1494 = vpow.pop %v1493
        %v1495 = vadd.f32 %v1464, 1.0
        %v1496 = vadd.f32 %v1466, 1.0
        %v1497 = vadd.f32 %v1468, 1.0
        %v1498 = vadd.f32 %v1470, 1.0
        %v1499 = vadd.f32 %v1472, 1.0
        %v1500 = vadd.f32 %v1474, 1.0
        %v1501 = vadd.f32 %v1476, 1.0
        %v1502 = vadd.f32 %v1478, 1.0
        %v1503 = vadd.f32 %v1480, 1.0
        %v1504 = vadd.f32 %v1482, 1.0
        %v1505 = vadd.f32 %v1484, 1.0
        %v1506 = vadd.f32 %v1486, 1.0
        %v1507 = vadd.f32 %v1488, 1.0
        %v1508 = vadd.f32 %v1490, 1.0
        %v1509 = vadd.f32 %v1492, 1.0
        %v1510 = vadd.f32 %v1494, 1.0
        %v1511 = vrcp.pop %v1495
        %v1512 = vmul.f32 1.0, %v1511
        %v1513 = vrcp.pop %v1496
        %v1514 = vmul.f32 1.0, %v1513
        %v1515 = vrcp.pop %v1497
        %v1516 = vmul.f32 1.0, %v1515
        %v1517 = vrcp.pop %v1498
        %v1518 = vmul.f32 1.0, %v1517
        %v1519 = vrcp.pop %v1499
        %v1520 = vmul.f32 1.0, %v1519
        %v1521 = vrcp.pop %v1500
        %v1522 = vmul.f32 1.0, %v1521
        %v1523 = vrcp.pop %v1501
        %v1524 = vmul.f32 1.0, %v1523
        %v1525 = vrcp.pop %v1502
        %v1526 = vmul.f32 1.0, %v1525
        %v1527 = vrcp.pop %v1503
        %v1528 = vmul.f32 1.0, %v1527
        %v1529 = vrcp.pop %v1504
        %v1530 = vmul.f32 1.0, %v1529
        %v1531 = vrcp.pop %v1505
        %v1532 = vmul.f32 1.0, %v1531
        %v1533 = vrcp.pop %v1506
        %v1534 = vmul.f32 1.0, %v1533
        %v1535 = vrcp.pop %v1507
        %v1536 = vmul.f32 1.0, %v1535
        %v1537 = vrcp.pop %v1508
        %v1538 = vmul.f32 1.0, %v1537
        %v1539 = vrcp.pop %v1509
        %v1540 = vmul.f32 1.0, %v1539
        %v1541 = vrcp.pop %v1510
        %v1542 = vmul.f32 1.0, %v1541
        %v1543 = vmul.f32 %v1512, %v946
        %v1544 = vmul.f32 %v1514, %v948
        %v1545 = vmul.f32 %v1516, %v1017
        %v1546 = vmul.f32 %v1518, %v1019
        %v1547 = vmul.f32 %v1520, %v1088
        %v1548 = vmul.f32 %v1522, %v1090
        %v1549 = vmul.f32 %v1524, %v1159
        %v1550 = vmul.f32 %v1526, %v1161
        %v1551 = vmul.f32 %v1528, %v1230
        %v1552 = vmul.f32 %v1530, %v1232
        %v1553 = vmul.f32 %v1532, %v1301
        %v1554 = vmul.f32 %v1534, %v1303
        %v1555 = vmul.f32 %v1536, %v1372
        %v1556 = vmul.f32 %v1538, %v1374
        %v1557 = vmul.f32 %v1540, %v1443
        %v1558 = vmul.f32 %v1542, %v1445
        %v1575 = vcombine.low %v1543, %v1544
        %v1576 = vcombine.low %v1545, %v1546
        %v1577 = vcombine.low %v1547, %v1548
        %v1578 = vcombine.low %v1549, %v1550
        %v1579 = vcombine.low %v1551, %v1552
        %v1580 = vcombine.low %v1553, %v1554
        %v1581 = vcombine.low %v1555, %v1556
        %v1582 = vcombine.low %v1557, %v1558
        %1591 = vst [vmem:[%s217] sm:$0xff] %v1575
        %1592 = vst [vmem:[%s217 + $0x8] sm:$0xff] %v1576
        %1593 = vst [vmem:[%s217 + $0x10] sm:$0xff] %v1577
        %1594 = vst [vmem:[%s217 + $0x18] sm:$0xff] %v1578
        %1595 = vst [vmem:[%s217 + $0x20] sm:$0xff] %v1579
        %1596 = vst [vmem:[%s217 + $0x28] sm:$0xff] %v1580
        %1597 = vst [vmem:[%s217 + $0x30] sm:$0xff] %v1581
        %1598 = vst [vmem:[%s217 + $0x38] sm:$0xff] %v1582
        %s1599 = sand.u32 %s113, 1
        %s1600 = scalar_lea.sflag [#allocation4], %s1599
        %s1601 = sand.u32 %s113, 1
        %s1602 = smul.addr %s1601, 64
        %s1603 = scalar_lea.vmem [#allocation7], %s1602
        // Predicated region
        $region41: #{tpu_custom_call.1} parent=31 // pred_check
          %p1604 = pneg %p123
        $region42: #{tpu_custom_call.1} parent=31 // pred_check_branch
          %1606 = sbr.rel (%p1604) target = $region44
        $region43: #{tpu_custom_call.1} parent=31 // pred_region
          %s1607 = smul.u32 16, %s26
          %s1609 = ssub.s32 1024, 1024
          %1610 = vsyncadd %s1600, %s1609
          %s1611 = smul.addr %s25, 16
          %s1612 = sadd.s32 %s1607, %s1611
          %s1613 = smul.addr %s1612, 64
          %s1614 = scalar_lea.hbm %s3, %s1613
          %s1616 = sshll.u32 %s1603, 4
          %s1617 = int_to_ptr.vmem [resolvable:$true] %s1616
          %1619 = dma.vmem_to_hbm [thread:$0]  %s1617, 1024, %s1614, %s1600
        $region44: #{tpu_custom_call.1} parent=31 // pred_fallthru
          _
      $region32: #{tpu_custom_call.1} parent=5 // pred_fallthru
        _
      %p1620 = scmp.le.s32.totalorder 2, %s16
      // Predicated region
      $region45: #{tpu_custom_call.1} parent=5 // pred_check
        %p1621 = pneg %p1620
      $region46: #{tpu_custom_call.1} parent=5 // pred_check_branch
        %1623 = sbr.rel (%p1621) target = $region48
      $region47: #{tpu_custom_call.1} parent=5 // pred_region
        %s1624 = ssub.s32 %s16, 2
        // Predicated region
        $region49: #{tpu_custom_call.1} parent=47 // pred_check
          %p1625 = pneg %p129
        $region50: #{tpu_custom_call.1} parent=47 // pred_check_branch
          %1627 = sbr.rel (%p1625) target = $region52
        $region51: #{tpu_custom_call.1} parent=47 // pred_region
          %s1628 = sand.u32 %s114, 1
          %s1629 = scalar_lea.sflag [#allocation4], %s1628
          %s1630 = sand.u32 %s114, 1
          %s1631 = smul.addr %s1630, 64
          %s1632 = scalar_lea.vmem [#allocation7], %s1631
          %1633 = dma.done %s1629, 1024
        $region52: #{tpu_custom_call.1} parent=47 // pred_fallthru
          _
      $region48: #{tpu_custom_call.1} parent=5 // pred_fallthru
        _
    $region6: #{tpu_custom_call.1} parent=1 // loop_footer
      %s20 = sadd.s32 1, %s16
    $region7: #{tpu_custom_call.1} parent=1 // loop_footer_branch
      %15 = sbr.rel target = $region3
    $region8: #{tpu_custom_call.1} parent=1 // loop_exit
      _
    %1634 = vsyncpa [#allocation3], 1
    %s1635 = scalar_lea.sflag [#allocation3], 1
    %1636 = vsyncpa %s1635, 1
    %1637 = vsyncpa [#allocation6], 1
    %1638 = vsyncpa [#allocation4], 1
    %s1639 = scalar_lea.sflag [#allocation4], 1
    %1640 = vsyncpa %s1639, 1

</llo_original>
